<compile_context>
chip_gen: v6e
topology: v6e:2x2x1
jax: 0.10.0
libtpu: 0.0.40
codegen_flags: <defaults>
</compile_context>

<pallas_src>
import math

import jax
import jax.numpy as jnp
import numpy as np
from jax.experimental import pallas as pl
from jax.experimental.pallas import tpu as pltpu


def attpool_kernel(x_ref, wsc_ref, wv_ref, bv_ref, o_ref):
    # x_ref:   (BB, L, D)  bf16  tokens for BB batch elements
    # wsc_ref: (D, T)      bf16  folded score weight  (Wk @ q.T) / sqrt(D)
    # wv_ref:  (D, D)      bf16  value weight
    # bv_ref:  (1, D)      f32   value bias
    # o_ref:   (BB, T, D)  bf16  attention-pooled output (pre-mlp)
    bb, l, d = x_ref.shape
    t = wsc_ref.shape[1]

    # one flat (BB*L, D) view of the tokens: free relayout when L % 16 == 0
    x2 = x_ref[...].reshape(bb * l, d)

    # scores: (BB*L, D)@(D, T) bf16 MXU matmul, f32 accumulate.
    # (the folded key bias is constant over L -> softmax-invariant -> dropped)
    s = jnp.dot(x2, wsc_ref[...], preferred_element_type=jnp.float32)
    # values: (BB*L, D)@(D, D) bf16 MXU matmul, f32 accumulate + f32 bias
    v = jnp.dot(x2, wv_ref[...], preferred_element_type=jnp.float32)
    v = v + bv_ref[...]

    s = s.reshape(bb, l, t)                                   # (BB, L, T)
    v = v.reshape(bb, l, d)                                   # (BB, L, D)

    # softmax over the sequence axis L (sublane reduce); EUP reciprocal
    m = jnp.max(s, axis=1, keepdims=True)
    e = jnp.exp(s - m)
    p = e * pl.reciprocal(jnp.sum(e, axis=1, keepdims=True), approx=True)

    # weighted sum over L.  T is tiny (degenerate MXU shape), so do it on the
    # VPU: lane-broadcast multiply + sublane reduce, f32 throughout.
    cols = []
    for ti in range(t):                                       # static, small T
        w_t = p[:, :, ti:ti + 1]                              # (BB, L, 1)
        cols.append(jnp.sum(w_t * v, axis=1, keepdims=True))  # (BB, 1, D)
    pooled = cols[0] if t == 1 else jnp.concatenate(cols, axis=1)
    o_ref[...] = pooled.astype(o_ref.dtype)                   # bf16 writeback


def _pick_batch_block(n, l, batch_block=None):
    """Largest divisor of n <= batch_block (auto: >=512 rows, >=8 grid steps)."""
    if batch_block is None:
        rows_target = -(-512 // l)            # ceil(512 / L): feed MXU / DMA
        steps_target = max(1, n // 8)         # keep >= 8 steps (4 per v7x core)
        batch_block = max(1, min(rows_target, steps_target))
    bb = max(1, min(int(batch_block), n))
    while n % bb:
        bb -= 1
    return bb


def attpool_cls(x, params, tokens=1, batch_block=None):
    """Pallas implementation of AttPoolcls.forward.

    x: (N, L, D) float32
    params: dict with probe (1, tokens, D) and (in, out)-layout weights/biases
            for query/key/value/mlp.  (The module's `out` Linear is unused in
            forward, so it is not passed.)
    """
    n, l, d = x.shape
    t = tokens
    scale = 1.0 / math.sqrt(d)

    # batch-invariant query, folded straight into the key projection (exact;
    # also folds the 1/sqrt(D) scale).  The key bias term (bk @ q.T) would be
    # constant over the sequence axis and cancels inside the softmax.
    q = params["probe"].reshape(t, d) @ params["wq"] + params["bq"]   # (T, D)
    wsc = (params["wk"] @ q.T) * scale                                # (D, T)

    # bf16 on the MXU-heavy operands; accumulation stays f32 in-kernel
    x_bf16 = x.astype(jnp.bfloat16)
    wsc_bf16 = wsc.astype(jnp.bfloat16)
    wv_bf16 = params["wv"].astype(jnp.bfloat16)
    bv = params["bv"]

    bb = _pick_batch_block(n, l, batch_block)
    grid = (n // bb,)

    # explicit VMEM budget: double-buffered blocks + in-kernel intermediates
    est = 2 * (bb * l * d * 2               # x block (bf16)
               + d * t * 2                  # wsc (bf16)
               + d * d * 2                  # wv  (bf16)
               + 8 * d * 4                  # bv  (f32, sublane-padded)
               + bb * max(t, 8) * d * 2)    # out block (bf16)
    est += 2 * bb * l * d * 4               # v and p*v intermediates (f32)
    est += 4 * bb * l * max(t, 128) * 4     # s / e / p (f32, lane-padded)
    est += bb * max(t, 8) * d * 4           # pooled (f32)
    try:
        cap = int(0.75 * pltpu.get_tpu_info().vmem_capacity_bytes)
    except Exception:                        # query unavailable: assume v7x
        cap = 48 * 1024 * 1024
    cap = max(cap, 16 * 1024 * 1024)
    vmem_limit = int(min(max(2 * est, 16 * 1024 * 1024), cap))

    grid_spec = pltpu.PrefetchScalarGridSpec(
        num_scalar_prefetch=0,
        grid=grid,
        in_specs=[
            pl.BlockSpec((bb, l, d), lambda i: (i, 0, 0)),    # x   (BB batch elems)
            pl.BlockSpec((d, t), lambda i: (0, 0)),           # wsc (replicated)
            pl.BlockSpec((d, d), lambda i: (0, 0)),           # wv  (replicated)
            pl.BlockSpec((1, d), lambda i: (0, 0)),           # bv  (replicated)
        ],
        out_specs=pl.BlockSpec((bb, t, d), lambda i: (i, 0, 0)),
    )

    pooled = pl.pallas_call(
        attpool_kernel,
        out_shape=jax.ShapeDtypeStruct((n, t, d), jnp.bfloat16),
        grid_spec=grid_spec,
        compiler_params=pltpu.CompilerParams(
            dimension_semantics=("parallel",),
            vmem_limit_bytes=vmem_limit),
    )(x_bf16, wsc_bf16, wv_bf16, bv)

    # final mlp: one (N*T, D)@(D, D) bf16 MXU matmul with f32 accumulation
    y = jnp.dot(pooled.reshape(n * t, d), params["wm"].astype(jnp.bfloat16),
                preferred_element_type=jnp.float32) + params["bm"]
    y = y.reshape(n, t, d)
    if tokens > 1:
        return y
    return y[:, 0, :]


def attpool_cls_ref(x, params, tokens=1):
    """Pure-JAX f32 reference mirroring the PyTorch forward."""
    n, l, d = x.shape
    probe = jnp.tile(params["probe"], (n, 1, 1))                         # (N, T, D)
    q = probe @ params["wq"] + params["bq"][0]
    k = x @ params["wk"] + params["bk"][0]
    v = x @ params["wv"] + params["bv"][0]
    att = jnp.einsum("nqd,nkd->nqk", q, k) / math.sqrt(d)
    att = jax.nn.softmax(att, axis=-1)
    y = jnp.einsum("nqk,nkd->nqd", att, v)
    y = y @ params["wm"] + params["bm"][0]
    if tokens > 1:
        return y
    return y[:, 0, :]


def init_params(key, embed_dim, tokens=1):
    ks = jax.random.split(key, 9)
    lim = 1.0 / math.sqrt(embed_dim)

    def lin(kw, kb):
        w = jax.random.uniform(kw, (embed_dim, embed_dim), jnp.float32, -lim, lim)
        b = jax.random.uniform(kb, (1, embed_dim), jnp.float32, -lim, lim)
        return w, b

    wq, bq = lin(ks[0], ks[1])
    wk, bk = lin(ks[2], ks[3])
    wv, bv = lin(ks[4], ks[5])
    wm, bm = lin(ks[6], ks[7])
    # probe is zeros in the PyTorch __init__; use a small deterministic random
    # value instead so the attention path is exercised non-trivially.
    probe = 0.02 * jax.random.normal(ks[8], (1, tokens, embed_dim), jnp.float32)
    # Note: the module's self.out Linear is never used in forward, so it is omitted.
    return {"probe": probe, "wq": wq, "bq": bq, "wk": wk, "bk": bk,
            "wv": wv, "bv": bv, "wm": wm, "bm": bm}


if __name__ == "__main__":
    # D multiple of 128 (lane-dense); N/L chosen so the auto batch block gives
    # BB*L = 512 rows per grid step and an 8-step grid (>= 4 steps per core
    # after the v7x megacore split), while the whole problem stays small.
    N, L, D, TOKENS = 64, 64, 128, 1
    key = jax.random.PRNGKey(0)
    kx, kp = jax.random.split(key)
    x = jax.random.normal(kx, (N, L, D), jnp.float32)
    params = init_params(kp, D, TOKENS)

    out = attpool_cls(x, params, tokens=TOKENS)
    out = jax.block_until_ready(out)

    ref = attpool_cls_ref(x, params, tokens=TOKENS)
    # bf16 projections + bf16 pooled/mlp + approx reciprocal -> relaxed tolerance
    np.testing.assert_allclose(np.asarray(out), np.asarray(ref), rtol=2e-2, atol=2e-2)

    print("KERNEL_OK")
</pallas_src>

<mosaic_0001>
module attributes {stable_mosaic.version = 11 : i64} {
  func.func @attpool_kernel(%arg0: i32, %arg1: memref<8x64x128xbf16, #tpu.memory_space<vmem>>, %arg2: memref<128x1xbf16, #tpu.memory_space<vmem>>, %arg3: memref<128x128xbf16, #tpu.memory_space<vmem>>, %arg4: memref<1x128xf32, #tpu.memory_space<vmem>>, %arg5: memref<8x1x128xbf16, #tpu.memory_space<vmem>>) attributes {dimension_semantics = [#tpu.dimension_semantics<parallel>], iteration_bounds = array<i64: 8>, scalar_prefetch = 0 : i64, scratch_operands = 0 : i64, tpu.core_type = #tpu.core_type<tc>, window_params = [{transform_indices = @transform_0, window_bounds = array<i64: 8, 64, 128>}, {pipeline_mode = #tpu.pipeline_mode<synchronous>, transform_indices = @transform_1, window_bounds = array<i64: 128, 1>}, {pipeline_mode = #tpu.pipeline_mode<synchronous>, transform_indices = @transform_2, window_bounds = array<i64: 128, 128>}, {pipeline_mode = #tpu.pipeline_mode<synchronous>, transform_indices = @transform_3, window_bounds = array<i64: 1, 128>}, {transform_indices = @transform_4, window_bounds = array<i64: 8, 1, 128>}]} {
    %c0 = arith.constant 0 : index
    %c0_0 = arith.constant 0 : index
    %c0_1 = arith.constant 0 : index
    %0 = vector.load %arg1[%c0, %c0_0, %c0_1] : memref<8x64x128xbf16, #tpu.memory_space<vmem>>, vector<8x64x128xbf16>
    %1 = vector.shape_cast %0 : vector<8x64x128xbf16> to vector<512x128xbf16>
    %c0_2 = arith.constant 0 : index
    %c0_3 = arith.constant 0 : index
    %2 = vector.load %arg2[%c0_2, %c0_3] : memref<128x1xbf16, #tpu.memory_space<vmem>>, vector<128x1xbf16>
    %cst = arith.constant dense<0.000000e+00> : vector<512x1xf32>
    %3 = tpu.matmul %1, %2, %cst {dimension_numbers = #tpu.dot_dimension_numbers<[1], [0], [0], [1], [0, 0, 1, 1], [], []>} : vector<512x128xbf16>, vector<128x1xbf16>, vector<512x1xf32> -> vector<512x1xf32>
    %c0_4 = arith.constant 0 : index
    %c0_5 = arith.constant 0 : index
    %4 = vector.load %arg3[%c0_4, %c0_5] : memref<128x128xbf16, #tpu.memory_space<vmem>>, vector<128x128xbf16>
    %cst_6 = arith.constant dense<0.000000e+00> : vector<512x128xf32>
    %5 = tpu.matmul %1, %4, %cst_6 {dimension_numbers = #tpu.dot_dimension_numbers<[1], [0], [0], [1], [0, 0, 1, 1], [], []>} : vector<512x128xbf16>, vector<128x128xbf16>, vector<512x128xf32> -> vector<512x128xf32>
    %c0_7 = arith.constant 0 : index
    %c0_8 = arith.constant 0 : index
    %6 = vector.load %arg4[%c0_7, %c0_8] : memref<1x128xf32, #tpu.memory_space<vmem>>, vector<1x128xf32>
    %7 = vector.broadcast %6 : vector<1x128xf32> to vector<512x128xf32>
    %8 = arith.addf %5, %7 : vector<512x128xf32>
    %9 = vector.shape_cast %3 : vector<512x1xf32> to vector<8x64x1xf32>
    %10 = vector.shape_cast %8 : vector<512x128xf32> to vector<8x64x128xf32>
    %cst_9 = arith.constant dense<0xFF800000> : vector<8x1xf32>
    %11 = vector.multi_reduction <maximumf>, %9, %cst_9 [1] : vector<8x64x1xf32> to vector<8x1xf32>
    %12 = vector.shape_cast %11 : vector<8x1xf32> to vector<8x1x1xf32>
    %13 = vector.broadcast %12 : vector<8x1x1xf32> to vector<8x64x1xf32>
    %14 = arith.subf %9, %13 : vector<8x64x1xf32>
    %15 = math.exp %14 : vector<8x64x1xf32>
    %cst_10 = arith.constant dense<0.000000e+00> : vector<8x1xf32>
    %16 = vector.multi_reduction <add>, %15, %cst_10 [1] : vector<8x64x1xf32> to vector<8x1xf32>
    %17 = vector.shape_cast %16 : vector<8x1xf32> to vector<8x1x1xf32>
    %18 = tpu.reciprocal %17 {approx = true} : vector<8x1x1xf32> -> vector<8x1x1xf32>
    %19 = vector.broadcast %18 : vector<8x1x1xf32> to vector<8x64x1xf32>
    %20 = arith.mulf %15, %19 : vector<8x64x1xf32>
    %21 = vector.broadcast %20 : vector<8x64x1xf32> to vector<8x64x128xf32>
    %22 = arith.mulf %21, %10 : vector<8x64x128xf32>
    %cst_11 = arith.constant dense<0.000000e+00> : vector<8x128xf32>
    %23 = vector.multi_reduction <add>, %22, %cst_11 [1] : vector<8x64x128xf32> to vector<8x128xf32>
    %24 = vector.shape_cast %23 : vector<8x128xf32> to vector<8x1x128xf32>
    %25 = arith.truncf %24 : vector<8x1x128xf32> to vector<8x1x128xbf16>
    %c0_12 = arith.constant 0 : index
    %c0_13 = arith.constant 0 : index
    %c0_14 = arith.constant 0 : index
    %26 = vector.load %arg5[%c0_12, %c0_13, %c0_14] : memref<8x1x128xbf16, #tpu.memory_space<vmem>>, vector<8x1x128xbf16>
    tpu.vector_store %arg5[%c0_12, %c0_13, %c0_14], %25 {strides = array<i32>} : memref<8x1x128xbf16, #tpu.memory_space<vmem>>, vector<8x1x128xbf16>,
    return
  }
  func.func @transform_0(%arg0: i32) -> (i32, i32, i32) {
    %c0_i32 = arith.constant 0 : i32
    %c0_i32_0 = arith.constant 0 : i32
    %c0_i32_1 = arith.constant 0 : i32
    return %arg0, %c0_i32, %c0_i32_0 : i32, i32, i32
  }
  func.func @transform_1(%arg0: i32) -> (i32, i32) {
    %c0_i32 = arith.constant 0 : i32
    %c0_i32_0 = arith.constant 0 : i32
    %c0_i32_1 = arith.constant 0 : i32
    return %c0_i32, %c0_i32_0 : i32, i32
  }
  func.func @transform_2(%arg0: i32) -> (i32, i32) {
    %c0_i32 = arith.constant 0 : i32
    %c0_i32_0 = arith.constant 0 : i32
    %c0_i32_1 = arith.constant 0 : i32
    return %c0_i32, %c0_i32_0 : i32, i32
  }
  func.func @transform_3(%arg0: i32) -> (i32, i32) {
    %c0_i32 = arith.constant 0 : i32
    %c0_i32_0 = arith.constant 0 : i32
    %c0_i32_1 = arith.constant 0 : i32
    return %c0_i32, %c0_i32_0 : i32, i32
  }
  func.func @transform_4(%arg0: i32) -> (i32, i32, i32) {
    %c0_i32 = arith.constant 0 : i32
    %c0_i32_0 = arith.constant 0 : i32
    %c0_i32_1 = arith.constant 0 : i32
    return %arg0, %c0_i32, %c0_i32_0 : i32, i32, i32
  }
}

</mosaic_0001>

<llo_original>
// kernel: tpu_custom_call.1
$region0: #{tpu_custom_call.1}
  #allocation0 [shape = 'u32[]', space=smem, size = 0x4, offset = 0x4, fixed_abs, tag = 'smem constant byte address 0x4 - core index']
  #allocation1 [shape = 'u32[144,128]{1,0:T(1,128)}', space=vmem, size = 0x12000, scoped, tag = 'internal scratch']
  %s0 = inlined_call_operand.hbm [shape: bf16[64,64,128], index: 0, kind: input, shape index: {}]
  %s1 = inlined_call_operand.vmem [shape: bf16[128,1], index: 1, kind: input, shape index: {}]
  %s2 = inlined_call_operand.vmem [shape: bf16[128,128], index: 2, kind: input, shape index: {}]
  %s3 = inlined_call_operand.vmem [shape: f32[1,128], index: 3, kind: input, shape index: {}]
  %s4 = inlined_call_operand.vmem [shape: bf16[64,1,128], index: 4, kind: output, shape index: {}]
  %s5 = sld [smem:[#allocation0]]
  $region53: #{tpu_custom_call.1} parent=0
    _
  %s7 = ssub.s32 1, %s5
  %s8 = scalar_select 0, %s7, %s5
  $region1: #{tpu_custom_call.1} parent=0
    #allocation2 [shape = 'u8[262144]{0}', space=vmem, size = 0x40000, scoped, tag = 'input window, operand 0']
    #allocation3 [shape = 's32[2]{0}', space=sflag, size = 0x8, scoped, tag = 'scoped memory for tpu_custom_call.1']
    %9 = vsyncpa [#allocation3], 0
    %s10 = scalar_lea.sflag [#allocation3], 1
    %11 = vsyncpa %s10, 0
    loop: start=0, step=1, limit=10
    $region2: #{tpu_custom_call.1} parent=1 // loop_pre_header
      _
    $region3: #{tpu_custom_call.1} parent=1 // loop_header
      %s13 = sphi 0, %s17
      %p14 = scmp.ge.s32.totalorder %s13, 10
      %s23 = sphi 0, %s25
      %s26 = sphi 0, %s23
      %s27 = sphi 0, %s26
      %s43 = sphi 0, %s27
      %s47 = sphi 0, %s47
      %s49 = sphi 0, %s47
      %s50 = sphi 0, %s49
      %s64 = sphi 0, %s50
      %s68 = sphi 0, %s68
      %s70 = sphi 0, %s68
      %s71 = sphi 0, %s70
      %s85 = sphi 0, %s71
      %s89 = sphi 0, %s89
      %s91 = sphi 0, %s89
      %s92 = sphi 0, %s91
      %s106 = sphi 0, %s92
      %s112 = sphi 0, %s114
      %s115 = sphi 0, %s112
      %s116 = sphi 0, %s115
      %s132 = sphi 0, %s116
    $region4: #{tpu_custom_call.1} parent=1 // loop_header_branch
      %16 = sbr.rel (%p14) target = $region8
    $region5: #{tpu_custom_call.1} parent=1 // loop_body
      %s18 = ssub.s32 %s13, 1
      %s19 = ssub.s32 %s13, 2
      %s20 = sadd.s32 %s13, 1
      %s21 = ssub.s32 %s13, %s20
      %p22 = scmp.eq.s32.totalorder %s21, 0
      %s24 = sadd.s32 %s23, 1
      %s25 = scalar_select %p22, %s23, %s24
      %p28 = pneg %p22
      %p29 = scmp.eq.s32.totalorder %s13, 7
      %p30 = por %p28, %p29
      %p31 = scmp.ne.s32.totalorder %s23, %s26
      %p32 = scmp.eq.s32.totalorder %s13, 0
      %p33 = por %p31, %p32
      %p34 = scmp.ne.s32.totalorder %s23, %s26
      %p35 = scmp.eq.s32.totalorder %s18, 7
      %p36 = por %p34, %p35
      %p37 = scmp.ne.s32.totalorder %s26, %s27
      %p38 = scmp.eq.s32.totalorder %s18, 0
      %p39 = por %p37, %p38
      %p40 = scmp.ne.s32.totalorder %s26, %s27
      %p41 = scmp.eq.s32.totalorder %s19, 7
      %p42 = por %p40, %p41
      %p44 = scmp.ne.s32.totalorder %s27, %s43
      %p45 = scmp.eq.s32.totalorder %s19, 0
      %p46 = por %p44, %p45
      %s48 = sadd.s32 %s47, 1
      %p51 = scmp.eq.s32.totalorder %s13, 7
      %p52 = scmp.ne.s32.totalorder %s47, %s49
      %p53 = scmp.eq.s32.totalorder %s13, 0
      %p54 = por %p52, %p53
      %p55 = scmp.ne.s32.totalorder %s47, %s49
      %p56 = scmp.eq.s32.totalorder %s18, 7
      %p57 = por %p55, %p56
      %p58 = scmp.ne.s32.totalorder %s49, %s50
      %p59 = scmp.eq.s32.totalorder %s18, 0
      %p60 = por %p58, %p59
      %p61 = scmp.ne.s32.totalorder %s49, %s50
      %p62 = scmp.eq.s32.totalorder %s19, 7
      %p63 = por %p61, %p62
      %p65 = scmp.ne.s32.totalorder %s50, %s64
      %p66 = scmp.eq.s32.totalorder %s19, 0
      %p67 = por %p65, %p66
      %s69 = sadd.s32 %s68, 1
      %p72 = scmp.eq.s32.totalorder %s13, 7
      %p73 = scmp.ne.s32.totalorder %s68, %s70
      %p74 = scmp.eq.s32.totalorder %s13, 0
      %p75 = por %p73, %p74
      %p76 = scmp.ne.s32.totalorder %s68, %s70
      %p77 = scmp.eq.s32.totalorder %s18, 7
      %p78 = por %p76, %p77
      %p79 = scmp.ne.s32.totalorder %s70, %s71
      %p80 = scmp.eq.s32.totalorder %s18, 0
      %p81 = por %p79, %p80
      %p82 = scmp.ne.s32.totalorder %s70, %s71
      %p83 = scmp.eq.s32.totalorder %s19, 7
      %p84 = por %p82, %p83
      %p86 = scmp.ne.s32.totalorder %s71, %s85
      %p87 = scmp.eq.s32.totalorder %s19, 0
      %p88 = por %p86, %p87
      %s90 = sadd.s32 %s89, 1
      %p93 = scmp.eq.s32.totalorder %s13, 7
      %p94 = scmp.ne.s32.totalorder %s89, %s91
      %p95 = scmp.eq.s32.totalorder %s13, 0
      %p96 = por %p94, %p95
      %p97 = scmp.ne.s32.totalorder %s89, %s91
      %p98 = scmp.eq.s32.totalorder %s18, 7
      %p99 = por %p97, %p98
      %p100 = scmp.ne.s32.totalorder %s91, %s92
      %p101 = scmp.eq.s32.totalorder %s18, 0
      %p102 = por %p100, %p101
      %p103 = scmp.ne.s32.totalorder %s91, %s92
      %p104 = scmp.eq.s32.totalorder %s19, 7
      %p105 = por %p103, %p104
      %p107 = scmp.ne.s32.totalorder %s92, %s106
      %p108 = scmp.eq.s32.totalorder %s19, 0
      %p109 = por %p107, %p108
      %s110 = ssub.s32 %s13, %s20
      %p111 = scmp.eq.s32.totalorder %s110, 0
      %s113 = sadd.s32 %s112, 1
      %s114 = scalar_select %p111, %s112, %s113
      %p117 = pneg %p111
      %p118 = scmp.eq.s32.totalorder %s13, 7
      %p119 = por %p117, %p118
      %p120 = scmp.ne.s32.totalorder %s112, %s115
      %p121 = scmp.eq.s32.totalorder %s13, 0
      %p122 = por %p120, %p121
      %p123 = scmp.ne.s32.totalorder %s112, %s115
      %p124 = scmp.eq.s32.totalorder %s18, 7
      %p125 = por %p123, %p124
      %p126 = scmp.ne.s32.totalorder %s115, %s116
      %p127 = scmp.eq.s32.totalorder %s18, 0
      %p128 = por %p126, %p127
      %p129 = scmp.ne.s32.totalorder %s115, %s116
      %p130 = scmp.eq.s32.totalorder %s19, 7
      %p131 = por %p129, %p130
      %p133 = scmp.ne.s32.totalorder %s116, %s132
      %p134 = scmp.eq.s32.totalorder %s19, 0
      %p135 = por %p133, %p134
      %p136 = scmp.le.s32.totalorder 1, %s13
      %p137 = scmp.lt.s32.totalorder %s13, 9
      %p138 = pnand %p136, %p137
      %p139 = pneg %p138
      // Predicated region
      $region9: #{tpu_custom_call.1} parent=5 // pred_check
        _
      $region10: #{tpu_custom_call.1} parent=5 // pred_check_branch
        %141 = sbr.rel (%p138) target = $region12
      $region11: #{tpu_custom_call.1} parent=5 // pred_region
        %s142 = ssub.s32 %s13, 1
        // Predicated region
        $region13: #{tpu_custom_call.1} parent=11 // pred_check
          %p143 = pneg %p60
        $region14: #{tpu_custom_call.1} parent=11 // pred_check_branch
          %145 = sbr.rel (%p143) target = $region16
        $region15: #{tpu_custom_call.1} parent=11 // pred_region
          _
        $region16: #{tpu_custom_call.1} parent=11 // pred_fallthru
          _
        // Predicated region
        $region17: #{tpu_custom_call.1} parent=11 // pred_check
          %p146 = pneg %p81
        $region18: #{tpu_custom_call.1} parent=11 // pred_check_branch
          %148 = sbr.rel (%p146) target = $region20
        $region19: #{tpu_custom_call.1} parent=11 // pred_region
          _
        $region20: #{tpu_custom_call.1} parent=11 // pred_fallthru
          _
        // Predicated region
        $region21: #{tpu_custom_call.1} parent=11 // pred_check
          %p149 = pneg %p102
        $region22: #{tpu_custom_call.1} parent=11 // pred_check_branch
          %151 = sbr.rel (%p149) target = $region24
        $region23: #{tpu_custom_call.1} parent=11 // pred_region
          _
        $region24: #{tpu_custom_call.1} parent=11 // pred_fallthru
          _
      $region12: #{tpu_custom_call.1} parent=5 // pred_fallthru
        _
      %p152 = scmp.lt.s32.totalorder %s13, 8
      // Predicated region
      $region25: #{tpu_custom_call.1} parent=5 // pred_check
        %p153 = pneg %p152
      $region26: #{tpu_custom_call.1} parent=5 // pred_check_branch
        %155 = sbr.rel (%p153) target = $region28
      $region27: #{tpu_custom_call.1} parent=5 // pred_region
        // Predicated region
        $region29: #{tpu_custom_call.1} parent=27 // pred_check
          %p156 = pneg %p33
        $region30: #{tpu_custom_call.1} parent=27 // pred_check_branch
          %158 = sbr.rel (%p156) target = $region32
        $region31: #{tpu_custom_call.1} parent=27 // pred_region
          %s159 = sand.u32 %s23, 1
          %s160 = scalar_lea.sflag [#allocation3], %s159
          %s161 = sand.u32 %s23, 1
          %s162 = smul.addr %s161, 256
          %s163 = scalar_lea.vmem [#allocation2], %s162
          %s164 = smul.u32 8, %s13
          %s166 = ssub.s32 4096, 4096
          %167 = vsyncadd %s160, %s166
          %s168 = smul.addr %s164, 8
          %s169 = smul.addr %s168, 64
          %s170 = scalar_lea.hbm %s0, %s169
          %s171 = sshll.u32 %s163, 4
          %s172 = int_to_ptr.vmem [resolvable:$true] %s171
          %177 = dma.hbm_to_vmem [thread:$0]  %s170, 4096, %s172, %s160, 64, 64, 4
        $region32: #{tpu_custom_call.1} parent=27 // pred_fallthru
          _
      $region28: #{tpu_custom_call.1} parent=5 // pred_fallthru
        _
      %p178 = scmp.le.s32.totalorder 1, %s13
      %p179 = scmp.lt.s32.totalorder %s13, 9
      %p180 = pnand %p178, %p179
      %p181 = pneg %p180
      // Predicated region
      $region33: #{tpu_custom_call.1} parent=5 // pred_check
        _
      $region34: #{tpu_custom_call.1} parent=5 // pred_check_branch
        %183 = sbr.rel (%p180) target = $region36
      $region35: #{tpu_custom_call.1} parent=5 // pred_region
        %s184 = ssub.s32 %s13, 1
        %s185 = sand.u32 %s26, 1
        %s186 = scalar_lea.sflag [#allocation3], %s185
        %s187 = sand.u32 %s26, 1
        %s188 = smul.addr %s187, 256
        %s189 = scalar_lea.vmem [#allocation2], %s188
        // Predicated region
        $region37: #{tpu_custom_call.1} parent=35 // pred_check
          %p190 = pneg %p39
        $region38: #{tpu_custom_call.1} parent=35 // pred_check_branch
          %192 = sbr.rel (%p190) target = $region40
        $region39: #{tpu_custom_call.1} parent=35 // pred_region
          %193 = dma.done %s186, 4096
        $region40: #{tpu_custom_call.1} parent=35 // pred_fallthru
          _
        %s194 = sand.u32 %s26, 1
        %s195 = scalar_lea.sflag [#allocation3], %s194
        %s196 = sand.u32 %s26, 1
        %s197 = smul.addr %s196, 256
        %s198 = scalar_lea.vmem [#allocation2], %s197
        %p199 = pneg %p39
        %p200 = pneg %p36
        %p201 = pneg %p60
        %p202 = pneg %p57
        %p203 = pneg %p81
        %p204 = pneg %p78
        %p205 = pneg %p102
        %p206 = pneg %p99
        %p207 = pneg %p128
        %p208 = pneg %p125
        %s209 = smul.u32 8, %s18
        %p210 = scmp.lt.s32.totalorder %s209, 63
        %s211 = scalar_select %p210, %s209, 63
        %s212 = scalar_lea.vmem %s4, %s211
        %s213 = smul.u32 8, %s18
        %s214 = smul.u32 8, %s18
        %p215 = scmp.lt.s32.totalorder %s214, 63
        %s216 = scalar_select %p215, %s214, 63
        %s217 = scalar_lea.vmem %s4, %s216
        %s218 = smul.u32 8, %s18
        %v220 = vld [vmem:[%s189] sm:$0xf]
        %v221 = vld [vmem:[%s189 + $0x4] sm:$0xf]
        %v222 = vld [vmem:[%s189 + $0x8] sm:$0xf]
        %v223 = vld [vmem:[%s189 + $0xc] sm:$0xf]
        %v224 = vld [vmem:[%s189 + $0x10] sm:$0xf]
        %v225 = vld [vmem:[%s189 + $0x14] sm:$0xf]
        %v226 = vld [vmem:[%s189 + $0x18] sm:$0xf]
        %v227 = vld [vmem:[%s189 + $0x1c] sm:$0xf]
        %v228 = vld [vmem:[%s189 + $0x20] sm:$0xf]
        %v229 = vld [vmem:[%s189 + $0x24] sm:$0xf]
        %v230 = vld [vmem:[%s189 + $0x28] sm:$0xf]
        %v231 = vld [vmem:[%s189 + $0x2c] sm:$0xf]
        %v232 = vld [vmem:[%s189 + $0x30] sm:$0xf]
        %v233 = vld [vmem:[%s189 + $0x34] sm:$0xf]
        %v234 = vld [vmem:[%s189 + $0x38] sm:$0xf]
        %v235 = vld [vmem:[%s189 + $0x3c] sm:$0xf]
        %v236 = vld [vmem:[%s189 + $0x40] sm:$0xf]
        %v237 = vld [vmem:[%s189 + $0x44] sm:$0xf]
        %v238 = vld [vmem:[%s189 + $0x48] sm:$0xf]
        %v239 = vld [vmem:[%s189 + $0x4c] sm:$0xf]
        %v240 = vld [vmem:[%s189 + $0x50] sm:$0xf]
        %v241 = vld [vmem:[%s189 + $0x54] sm:$0xf]
        %v242 = vld [vmem:[%s189 + $0x58] sm:$0xf]
        %v243 = vld [vmem:[%s189 + $0x5c] sm:$0xf]
        %v244 = vld [vmem:[%s189 + $0x60] sm:$0xf]
        %v245 = vld [vmem:[%s189 + $0x64] sm:$0xf]
        %v246 = vld [vmem:[%s189 + $0x68] sm:$0xf]
        %v247 = vld [vmem:[%s189 + $0x6c] sm:$0xf]
        %v248 = vld [vmem:[%s189 + $0x70] sm:$0xf]
        %v249 = vld [vmem:[%s189 + $0x74] sm:$0xf]
        %v250 = vld [vmem:[%s189 + $0x78] sm:$0xf]
        %v251 = vld [vmem:[%s189 + $0x7c] sm:$0xf]
        %v252 = vld [vmem:[%s189 + $0x80] sm:$0xf]
        %v253 = vld [vmem:[%s189 + $0x84] sm:$0xf]
        %v254 = vld [vmem:[%s189 + $0x88] sm:$0xf]
        %v255 = vld [vmem:[%s189 + $0x8c] sm:$0xf]
        %v256 = vld [vmem:[%s189 + $0x90] sm:$0xf]
        %v257 = vld [vmem:[%s189 + $0x94] sm:$0xf]
        %v258 = vld [vmem:[%s189 + $0x98] sm:$0xf]
        %v259 = vld [vmem:[%s189 + $0x9c] sm:$0xf]
        %v260 = vld [vmem:[%s189 + $0xa0] sm:$0xf]
        %v261 = vld [vmem:[%s189 + $0xa4] sm:$0xf]
        %v262 = vld [vmem:[%s189 + $0xa8] sm:$0xf]
        %v263 = vld [vmem:[%s189 + $0xac] sm:$0xf]
        %v264 = vld [vmem:[%s189 + $0xb0] sm:$0xf]
        %v265 = vld [vmem:[%s189 + $0xb4] sm:$0xf]
        %v266 = vld [vmem:[%s189 + $0xb8] sm:$0xf]
        %v267 = vld [vmem:[%s189 + $0xbc] sm:$0xf]
        %v268 = vld [vmem:[%s189 + $0xc0] sm:$0xf]
        %v269 = vld [vmem:[%s189 + $0xc4] sm:$0xf]
        %v270 = vld [vmem:[%s189 + $0xc8] sm:$0xf]
        %v271 = vld [vmem:[%s189 + $0xcc] sm:$0xf]
        %v272 = vld [vmem:[%s189 + $0xd0] sm:$0xf]
        %v273 = vld [vmem:[%s189 + $0xd4] sm:$0xf]
        %v274 = vld [vmem:[%s189 + $0xd8] sm:$0xf]
        %v275 = vld [vmem:[%s189 + $0xdc] sm:$0xf]
        %v276 = vld [vmem:[%s189 + $0xe0] sm:$0xf]
        %v277 = vld [vmem:[%s189 + $0xe4] sm:$0xf]
        %v278 = vld [vmem:[%s189 + $0xe8] sm:$0xf]
        %v279 = vld [vmem:[%s189 + $0xec] sm:$0xf]
        %v280 = vld [vmem:[%s189 + $0xf0] sm:$0xf]
        %v281 = vld [vmem:[%s189 + $0xf4] sm:$0xf]
        %v282 = vld [vmem:[%s189 + $0xf8] sm:$0xf]
        %v283 = vld [vmem:[%s189 + $0xfc] sm:$0xf]
        %v284 = vld [vmem:[%s1] sm:$0xf]
        %v285 = vld [vmem:[%s1 + $0x4] sm:$0xf]
        %v286 = vld [vmem:[%s1 + $0x8] sm:$0xf]
        %v287 = vld [vmem:[%s1 + $0xc] sm:$0xf]
        %v288 = vld [vmem:[%s1 + $0x10] sm:$0xf]
        %v289 = vld [vmem:[%s1 + $0x14] sm:$0xf]
        %v290 = vld [vmem:[%s1 + $0x18] sm:$0xf]
        %v291 = vld [vmem:[%s1 + $0x1c] sm:$0xf]
        %v292 = vld [vmem:[%s1 + $0x20] sm:$0xf]
        %v293 = vld [vmem:[%s1 + $0x24] sm:$0xf]
        %v294 = vld [vmem:[%s1 + $0x28] sm:$0xf]
        %v295 = vld [vmem:[%s1 + $0x2c] sm:$0xf]
        %v296 = vld [vmem:[%s1 + $0x30] sm:$0xf]
        %v297 = vld [vmem:[%s1 + $0x34] sm:$0xf]
        %v298 = vld [vmem:[%s1 + $0x38] sm:$0xf]
        %v299 = vld [vmem:[%s1 + $0x3c] sm:$0xf]
        %v364 = vunpack.c.l.b16 %v220
        %v365 = vunpack.c.l.b16 %v221
        %v366 = vunpack.c.l.b16 %v222
        %v367 = vunpack.c.l.b16 %v223
        %v368 = vunpack.c.l.b16 %v224
        %v369 = vunpack.c.l.b16 %v225
        %v370 = vunpack.c.l.b16 %v226
        %v371 = vunpack.c.l.b16 %v227
        %v372 = vunpack.c.l.b16 %v228
        %v373 = vunpack.c.l.b16 %v229
        %v374 = vunpack.c.l.b16 %v230
        %v375 = vunpack.c.l.b16 %v231
        %v376 = vunpack.c.l.b16 %v232
        %v377 = vunpack.c.l.b16 %v233
        %v378 = vunpack.c.l.b16 %v234
        %v379 = vunpack.c.l.b16 %v235
        %v380 = vunpack.c.l.b16 %v236
        %v381 = vunpack.c.l.b16 %v237
        %v382 = vunpack.c.l.b16 %v238
        %v383 = vunpack.c.l.b16 %v239
        %v384 = vunpack.c.l.b16 %v240
        %v385 = vunpack.c.l.b16 %v241
        %v386 = vunpack.c.l.b16 %v242
        %v387 = vunpack.c.l.b16 %v243
        %v388 = vunpack.c.l.b16 %v244
        %v389 = vunpack.c.l.b16 %v245
        %v390 = vunpack.c.l.b16 %v246
        %v391 = vunpack.c.l.b16 %v247
        %v392 = vunpack.c.l.b16 %v248
        %v393 = vunpack.c.l.b16 %v249
        %v394 = vunpack.c.l.b16 %v250
        %v395 = vunpack.c.l.b16 %v251
        %v396 = vunpack.c.l.b16 %v252
        %v397 = vunpack.c.l.b16 %v253
        %v398 = vunpack.c.l.b16 %v254
        %v399 = vunpack.c.l.b16 %v255
        %v400 = vunpack.c.l.b16 %v256
        %v401 = vunpack.c.l.b16 %v257
        %v402 = vunpack.c.l.b16 %v258
        %v403 = vunpack.c.l.b16 %v259
        %v404 = vunpack.c.l.b16 %v260
        %v405 = vunpack.c.l.b16 %v261
        %v406 = vunpack.c.l.b16 %v262
        %v407 = vunpack.c.l.b16 %v263
        %v408 = vunpack.c.l.b16 %v264
        %v409 = vunpack.c.l.b16 %v265
        %v410 = vunpack.c.l.b16 %v266
        %v411 = vunpack.c.l.b16 %v267
        %v412 = vunpack.c.l.b16 %v268
        %v413 = vunpack.c.l.b16 %v269
        %v414 = vunpack.c.l.b16 %v270
        %v415 = vunpack.c.l.b16 %v271
        %v416 = vunpack.c.l.b16 %v272
        %v417 = vunpack.c.l.b16 %v273
        %v418 = vunpack.c.l.b16 %v274
        %v419 = vunpack.c.l.b16 %v275
        %v420 = vunpack.c.l.b16 %v276
        %v421 = vunpack.c.l.b16 %v277
        %v422 = vunpack.c.l.b16 %v278
        %v423 = vunpack.c.l.b16 %v279
        %v424 = vunpack.c.l.b16 %v280
        %v425 = vunpack.c.l.b16 %v281
        %v426 = vunpack.c.l.b16 %v282
        %v427 = vunpack.c.l.b16 %v283
        %v428 = vpack.c.b16 %v365, %v364
        %v429 = vpack.c.b16 %v367, %v366
        %v430 = vpack.c.b16 %v369, %v368
        %v431 = vpack.c.b16 %v371, %v370
        %v432 = vpack.c.b16 %v373, %v372
        %v433 = vpack.c.b16 %v375, %v374
        %v434 = vpack.c.b16 %v377, %v376
        %v435 = vpack.c.b16 %v379, %v378
        %v436 = vpack.c.b16 %v381, %v380
        %v437 = vpack.c.b16 %v383, %v382
        %v438 = vpack.c.b16 %v385, %v384
        %v439 = vpack.c.b16 %v387, %v386
        %v440 = vpack.c.b16 %v389, %v388
        %v441 = vpack.c.b16 %v391, %v390
        %v442 = vpack.c.b16 %v393, %v392
        %v443 = vpack.c.b16 %v395, %v394
        %v444 = vpack.c.b16 %v397, %v396
        %v445 = vpack.c.b16 %v399, %v398
        %v446 = vpack.c.b16 %v401, %v400
        %v447 = vpack.c.b16 %v403, %v402
        %v448 = vpack.c.b16 %v405, %v404
        %v449 = vpack.c.b16 %v407, %v406
        %v450 = vpack.c.b16 %v409, %v408
        %v451 = vpack.c.b16 %v411, %v410
        %v452 = vpack.c.b16 %v413, %v412
        %v453 = vpack.c.b16 %v415, %v414
        %v454 = vpack.c.b16 %v417, %v416
        %v455 = vpack.c.b16 %v419, %v418
        %v456 = vpack.c.b16 %v421, %v420
        %v457 = vpack.c.b16 %v423, %v422
        %v458 = vpack.c.b16 %v425, %v424
        %v459 = vpack.c.b16 %v427, %v426
        %v508 = vunpack.c.l.b16 %v284
        %v509 = vunpack.c.l.b16 %v285
        %v510 = vunpack.c.l.b16 %v286
        %v511 = vunpack.c.l.b16 %v287
        %v512 = vunpack.c.l.b16 %v288
        %v513 = vunpack.c.l.b16 %v289
        %v514 = vunpack.c.l.b16 %v290
        %v515 = vunpack.c.l.b16 %v291
        %v516 = vunpack.c.l.b16 %v292
        %v517 = vunpack.c.l.b16 %v293
        %v518 = vunpack.c.l.b16 %v294
        %v519 = vunpack.c.l.b16 %v295
        %v520 = vunpack.c.l.b16 %v296
        %v521 = vunpack.c.l.b16 %v297
        %v522 = vunpack.c.l.b16 %v298
        %v523 = vunpack.c.l.b16 %v299
        %v524 = vpack.c.b16 %v509, %v508
        %v525 = vpack.c.b16 %v511, %v510
        %v526 = vpack.c.b16 %v513, %v512
        %v527 = vpack.c.b16 %v515, %v514
        %v528 = vpack.c.b16 %v517, %v516
        %v529 = vpack.c.b16 %v519, %v518
        %v530 = vpack.c.b16 %v521, %v520
        %v531 = vpack.c.b16 %v523, %v522
        %540 = vmatprep.subr.bf16.mxu0 0
        %541 = vmatpush1.bf16.msra.mxu0 %v531
        %542 = vmatprep.subr.bf16.mxu0 0
        %543 = vmatpush1.bf16.msra.mxu0 %v530
        %544 = vmatprep.subr.bf16.mxu0 0
        %545 = vmatpush1.bf16.msra.mxu0 %v529
        %546 = vmatprep.subr.bf16.mxu0 0
        %547 = vmatpush1.bf16.msra.mxu0 %v528
        %548 = vmatprep.subr.bf16.mxu0 0
        %549 = vmatpush1.bf16.msra.mxu0 %v527
        %550 = vmatprep.subr.bf16.mxu0 0
        %551 = vmatpush1.bf16.msra.mxu0 %v526
        %552 = vmatprep.subr.bf16.mxu0 0
        %553 = vmatpush1.bf16.msra.mxu0 %v525
        %554 = vmatprep.subr.bf16.mxu0 0
        %555 = vmatpush1.bf16.msra.mxu0 %v524
        %556 = vmatprep.subr.bf16.mxu0 0
        %557 = vmatpush2.bf16.msra.mxu0 0
        %558 = vmatprep.subr.bf16.mxu0 0
        %559 = vmatpush2.bf16.msra.mxu0 0
        %560 = vmatprep.subr.bf16.mxu0 0
        %561 = vmatpush2.bf16.msra.mxu0 0
        %562 = vmatprep.subr.bf16.mxu0 0
        %563 = vmatpush2.bf16.msra.mxu0 0
        %564 = vmatprep.subr.bf16.mxu0 0
        %565 = vmatpush2.bf16.msra.mxu0 0
        %566 = vmatprep.subr.bf16.mxu0 0
        %567 = vmatpush2.bf16.msra.mxu0 0
        %568 = vmatprep.subr.bf16.mxu0 0
        %569 = vmatpush2.bf16.msra.mxu0 0
        %570 = vmatprep.subr.bf16.mxu0 0
        %571 = vmatpush2.bf16.msra.mxu0 0
        %572 = vmatprep.mubr.bf16.mxu0 0
        %573 = vmatmul.mubr.bf16.gmra.mxu0 %v428
        %v574 = vpop.f32.mrf.mxu0
        %v575 = vadd.f32 0.0, %v574
        %v576 = vpop.f32.mrf.mxu0
        %v577 = vpop.f32.mrf.mxu0
        %v578 = vadd.f32 0.0, %v577
        %v579 = vpop.f32.mrf.mxu0
        %580 = vmatprep.mubr.bf16.mxu0 0
        %581 = vmatmul.mubr.bf16.gmra.mxu0 %v429
        %v582 = vpop.f32.mrf.mxu0
        %v583 = vadd.f32 0.0, %v582
        %v584 = vpop.f32.mrf.mxu0
        %v585 = vpop.f32.mrf.mxu0
        %v586 = vadd.f32 0.0, %v585
        %v587 = vpop.f32.mrf.mxu0
        %588 = vmatprep.mubr.bf16.mxu0 0
        %589 = vmatmul.mubr.bf16.gmra.mxu0 %v430
        %v590 = vpop.f32.mrf.mxu0
        %v591 = vadd.f32 0.0, %v590
        %v592 = vpop.f32.mrf.mxu0
        %v593 = vpop.f32.mrf.mxu0
        %v594 = vadd.f32 0.0, %v593
        %v595 = vpop.f32.mrf.mxu0
        %596 = vmatprep.mubr.bf16.mxu0 0
        %597 = vmatmul.mubr.bf16.gmra.mxu0 %v431
        %v598 = vpop.f32.mrf.mxu0
        %v599 = vadd.f32 0.0, %v598
        %v600 = vpop.f32.mrf.mxu0
        %v601 = vpop.f32.mrf.mxu0
        %v602 = vadd.f32 0.0, %v601
        %v603 = vpop.f32.mrf.mxu0
        %604 = vmatprep.mubr.bf16.mxu0 0
        %605 = vmatmul.mubr.bf16.gmra.mxu0 %v432
        %v606 = vpop.f32.mrf.mxu0
        %v607 = vadd.f32 0.0, %v606
        %v608 = vpop.f32.mrf.mxu0
        %v609 = vpop.f32.mrf.mxu0
        %v610 = vadd.f32 0.0, %v609
        %v611 = vpop.f32.mrf.mxu0
        %612 = vmatprep.mubr.bf16.mxu0 0
        %613 = vmatmul.mubr.bf16.gmra.mxu0 %v433
        %v614 = vpop.f32.mrf.mxu0
        %v615 = vadd.f32 0.0, %v614
        %v616 = vpop.f32.mrf.mxu0
        %v617 = vpop.f32.mrf.mxu0
        %v618 = vadd.f32 0.0, %v617
        %v619 = vpop.f32.mrf.mxu0
        %620 = vmatprep.mubr.bf16.mxu0 0
        %621 = vmatmul.mubr.bf16.gmra.mxu0 %v434
        %v622 = vpop.f32.mrf.mxu0
        %v623 = vadd.f32 0.0, %v622
        %v624 = vpop.f32.mrf.mxu0
        %v625 = vpop.f32.mrf.mxu0
        %v626 = vadd.f32 0.0, %v625
        %v627 = vpop.f32.mrf.mxu0
        %628 = vmatprep.mubr.bf16.mxu0 0
        %629 = vmatmul.mubr.bf16.gmra.mxu0 %v435
        %v630 = vpop.f32.mrf.mxu0
        %v631 = vadd.f32 0.0, %v630
        %v632 = vpop.f32.mrf.mxu0
        %v633 = vpop.f32.mrf.mxu0
        %v634 = vadd.f32 0.0, %v633
        %v635 = vpop.f32.mrf.mxu0
        %636 = vmatprep.mubr.bf16.mxu0 0
        %637 = vmatmul.mubr.bf16.gmra.mxu0 %v436
        %v638 = vpop.f32.mrf.mxu0
        %v639 = vadd.f32 0.0, %v638
        %v640 = vpop.f32.mrf.mxu0
        %v641 = vpop.f32.mrf.mxu0
        %v642 = vadd.f32 0.0, %v641
        %v643 = vpop.f32.mrf.mxu0
        %644 = vmatprep.mubr.bf16.mxu0 0
        %645 = vmatmul.mubr.bf16.gmra.mxu0 %v437
        %v646 = vpop.f32.mrf.mxu0
        %v647 = vadd.f32 0.0, %v646
        %v648 = vpop.f32.mrf.mxu0
        %v649 = vpop.f32.mrf.mxu0
        %v650 = vadd.f32 0.0, %v649
        %v651 = vpop.f32.mrf.mxu0
        %652 = vmatprep.mubr.bf16.mxu0 0
        %653 = vmatmul.mubr.bf16.gmra.mxu0 %v438
        %v654 = vpop.f32.mrf.mxu0
        %v655 = vadd.f32 0.0, %v654
        %v656 = vpop.f32.mrf.mxu0
        %v657 = vpop.f32.mrf.mxu0
        %v658 = vadd.f32 0.0, %v657
        %v659 = vpop.f32.mrf.mxu0
        %660 = vmatprep.mubr.bf16.mxu0 0
        %661 = vmatmul.mubr.bf16.gmra.mxu0 %v439
        %v662 = vpop.f32.mrf.mxu0
        %v663 = vadd.f32 0.0, %v662
        %v664 = vpop.f32.mrf.mxu0
        %v665 = vpop.f32.mrf.mxu0
        %v666 = vadd.f32 0.0, %v665
        %v667 = vpop.f32.mrf.mxu0
        %668 = vmatprep.mubr.bf16.mxu0 0
        %669 = vmatmul.mubr.bf16.gmra.mxu0 %v440
        %v670 = vpop.f32.mrf.mxu0
        %v671 = vadd.f32 0.0, %v670
        %v672 = vpop.f32.mrf.mxu0
        %v673 = vpop.f32.mrf.mxu0
        %v674 = vadd.f32 0.0, %v673
        %v675 = vpop.f32.mrf.mxu0
        %676 = vmatprep.mubr.bf16.mxu0 0
        %677 = vmatmul.mubr.bf16.gmra.mxu0 %v441
        %v678 = vpop.f32.mrf.mxu0
        %v679 = vadd.f32 0.0, %v678
        %v680 = vpop.f32.mrf.mxu0
        %v681 = vpop.f32.mrf.mxu0
        %v682 = vadd.f32 0.0, %v681
        %v683 = vpop.f32.mrf.mxu0
        %684 = vmatprep.mubr.bf16.mxu0 0
        %685 = vmatmul.mubr.bf16.gmra.mxu0 %v442
        %v686 = vpop.f32.mrf.mxu0
        %v687 = vadd.f32 0.0, %v686
        %v688 = vpop.f32.mrf.mxu0
        %v689 = vpop.f32.mrf.mxu0
        %v690 = vadd.f32 0.0, %v689
        %v691 = vpop.f32.mrf.mxu0
        %692 = vmatprep.mubr.bf16.mxu0 0
        %693 = vmatmul.mubr.bf16.gmra.mxu0 %v443
        %v694 = vpop.f32.mrf.mxu0
        %v695 = vadd.f32 0.0, %v694
        %v696 = vpop.f32.mrf.mxu0
        %v697 = vpop.f32.mrf.mxu0
        %v698 = vadd.f32 0.0, %v697
        %v699 = vpop.f32.mrf.mxu0
        %700 = vmatprep.mubr.bf16.mxu0 0
        %701 = vmatmul.mubr.bf16.gmra.mxu0 %v444
        %v702 = vpop.f32.mrf.mxu0
        %v703 = vadd.f32 0.0, %v702
        %v704 = vpop.f32.mrf.mxu0
        %v705 = vpop.f32.mrf.mxu0
        %v706 = vadd.f32 0.0, %v705
        %v707 = vpop.f32.mrf.mxu0
        %708 = vmatprep.mubr.bf16.mxu0 0
        %709 = vmatmul.mubr.bf16.gmra.mxu0 %v445
        %v710 = vpop.f32.mrf.mxu0
        %v711 = vadd.f32 0.0, %v710
        %v712 = vpop.f32.mrf.mxu0
        %v713 = vpop.f32.mrf.mxu0
        %v714 = vadd.f32 0.0, %v713
        %v715 = vpop.f32.mrf.mxu0
        %716 = vmatprep.mubr.bf16.mxu0 0
        %717 = vmatmul.mubr.bf16.gmra.mxu0 %v446
        %v718 = vpop.f32.mrf.mxu0
        %v719 = vadd.f32 0.0, %v718
        %v720 = vpop.f32.mrf.mxu0
        %v721 = vpop.f32.mrf.mxu0
        %v722 = vadd.f32 0.0, %v721
        %v723 = vpop.f32.mrf.mxu0
        %724 = vmatprep.mubr.bf16.mxu0 0
        %725 = vmatmul.mubr.bf16.gmra.mxu0 %v447
        %v726 = vpop.f32.mrf.mxu0
        %v727 = vadd.f32 0.0, %v726
        %v728 = vpop.f32.mrf.mxu0
        %v729 = vpop.f32.mrf.mxu0
        %v730 = vadd.f32 0.0, %v729
        %v731 = vpop.f32.mrf.mxu0
        %732 = vmatprep.mubr.bf16.mxu0 0
        %733 = vmatmul.mubr.bf16.gmra.mxu0 %v448
        %v734 = vpop.f32.mrf.mxu0
        %v735 = vadd.f32 0.0, %v734
        %v736 = vpop.f32.mrf.mxu0
        %v737 = vpop.f32.mrf.mxu0
        %v738 = vadd.f32 0.0, %v737
        %v739 = vpop.f32.mrf.mxu0
        %740 = vmatprep.mubr.bf16.mxu0 0
        %741 = vmatmul.mubr.bf16.gmra.mxu0 %v449
        %v742 = vpop.f32.mrf.mxu0
        %v743 = vadd.f32 0.0, %v742
        %v744 = vpop.f32.mrf.mxu0
        %v745 = vpop.f32.mrf.mxu0
        %v746 = vadd.f32 0.0, %v745
        %v747 = vpop.f32.mrf.mxu0
        %748 = vmatprep.mubr.bf16.mxu0 0
        %749 = vmatmul.mubr.bf16.gmra.mxu0 %v450
        %v750 = vpop.f32.mrf.mxu0
        %v751 = vadd.f32 0.0, %v750
        %v752 = vpop.f32.mrf.mxu0
        %v753 = vpop.f32.mrf.mxu0
        %v754 = vadd.f32 0.0, %v753
        %v755 = vpop.f32.mrf.mxu0
        %756 = vmatprep.mubr.bf16.mxu0 0
        %757 = vmatmul.mubr.bf16.gmra.mxu0 %v451
        %v758 = vpop.f32.mrf.mxu0
        %v759 = vadd.f32 0.0, %v758
        %v760 = vpop.f32.mrf.mxu0
        %v761 = vpop.f32.mrf.mxu0
        %v762 = vadd.f32 0.0, %v761
        %v763 = vpop.f32.mrf.mxu0
        %764 = vmatprep.mubr.bf16.mxu0 0
        %765 = vmatmul.mubr.bf16.gmra.mxu0 %v452
        %v766 = vpop.f32.mrf.mxu0
        %v767 = vadd.f32 0.0, %v766
        %v768 = vpop.f32.mrf.mxu0
        %v769 = vpop.f32.mrf.mxu0
        %v770 = vadd.f32 0.0, %v769
        %v771 = vpop.f32.mrf.mxu0
        %772 = vmatprep.mubr.bf16.mxu0 0
        %773 = vmatmul.mubr.bf16.gmra.mxu0 %v453
        %v774 = vpop.f32.mrf.mxu0
        %v775 = vadd.f32 0.0, %v774
        %v776 = vpop.f32.mrf.mxu0
        %v777 = vpop.f32.mrf.mxu0
        %v778 = vadd.f32 0.0, %v777
        %v779 = vpop.f32.mrf.mxu0
        %780 = vmatprep.mubr.bf16.mxu0 0
        %781 = vmatmul.mubr.bf16.gmra.mxu0 %v454
        %v782 = vpop.f32.mrf.mxu0
        %v783 = vadd.f32 0.0, %v782
        %v784 = vpop.f32.mrf.mxu0
        %v785 = vpop.f32.mrf.mxu0
        %v786 = vadd.f32 0.0, %v785
        %v787 = vpop.f32.mrf.mxu0
        %788 = vmatprep.mubr.bf16.mxu0 0
        %789 = vmatmul.mubr.bf16.gmra.mxu0 %v455
        %v790 = vpop.f32.mrf.mxu0
        %v791 = vadd.f32 0.0, %v790
        %v792 = vpop.f32.mrf.mxu0
        %v793 = vpop.f32.mrf.mxu0
        %v794 = vadd.f32 0.0, %v793
        %v795 = vpop.f32.mrf.mxu0
        %796 = vmatprep.mubr.bf16.mxu0 0
        %797 = vmatmul.mubr.bf16.gmra.mxu0 %v456
        %v798 = vpop.f32.mrf.mxu0
        %v799 = vadd.f32 0.0, %v798
        %v800 = vpop.f32.mrf.mxu0
        %v801 = vpop.f32.mrf.mxu0
        %v802 = vadd.f32 0.0, %v801
        %v803 = vpop.f32.mrf.mxu0
        %804 = vmatprep.mubr.bf16.mxu0 0
        %805 = vmatmul.mubr.bf16.gmra.mxu0 %v457
        %v806 = vpop.f32.mrf.mxu0
        %v807 = vadd.f32 0.0, %v806
        %v808 = vpop.f32.mrf.mxu0
        %v809 = vpop.f32.mrf.mxu0
        %v810 = vadd.f32 0.0, %v809
        %v811 = vpop.f32.mrf.mxu0
        %812 = vmatprep.mubr.bf16.mxu0 0
        %813 = vmatmul.mubr.bf16.gmra.mxu0 %v458
        %v814 = vpop.f32.mrf.mxu0
        %v815 = vadd.f32 0.0, %v814
        %v816 = vpop.f32.mrf.mxu0
        %v817 = vpop.f32.mrf.mxu0
        %v818 = vadd.f32 0.0, %v817
        %v819 = vpop.f32.mrf.mxu0
        %820 = vmatprep.mubr.bf16.mxu0 0
        %821 = vmatmul.mubr.bf16.gmra.mxu0 %v459
        %v822 = vpop.f32.mrf.mxu0
        %v823 = vadd.f32 0.0, %v822
        %v824 = vpop.f32.mrf.mxu0
        %v825 = vpop.f32.mrf.mxu0
        %v826 = vadd.f32 0.0, %v825
        %v827 = vpop.f32.mrf.mxu0
        %828 = vdwg.mxu0
        %v829 = vld [vmem:[%s2] sm:$0xf]
        %v830 = vld [vmem:[%s2 + $0x4] sm:$0xf]
        %v831 = vld [vmem:[%s2 + $0x8] sm:$0xf]
        %v832 = vld [vmem:[%s2 + $0xc] sm:$0xf]
        %v833 = vld [vmem:[%s2 + $0x10] sm:$0xf]
        %v834 = vld [vmem:[%s2 + $0x14] sm:$0xf]
        %v835 = vld [vmem:[%s2 + $0x18] sm:$0xf]
        %v836 = vld [vmem:[%s2 + $0x1c] sm:$0xf]
        %v837 = vld [vmem:[%s2 + $0x20] sm:$0xf]
        %v838 = vld [vmem:[%s2 + $0x24] sm:$0xf]
        %v839 = vld [vmem:[%s2 + $0x28] sm:$0xf]
        %v840 = vld [vmem:[%s2 + $0x2c] sm:$0xf]
        %v841 = vld [vmem:[%s2 + $0x30] sm:$0xf]
        %v842 = vld [vmem:[%s2 + $0x34] sm:$0xf]
        %v843 = vld [vmem:[%s2 + $0x38] sm:$0xf]
        %v844 = vld [vmem:[%s2 + $0x3c] sm:$0xf]
        %v845 = vld [vmem:[%s3] sm:$0x1]
        %v847 = vlaneseq
        %v848 = vshrl.u32 %v847, 7
        %v849 = vsub.s32 0, %v848
        %v850 = vrot.slane %v845, %v849
        %v868 = vunpack.c.l.b16 %v829
        %v869 = vunpack.c.l.b16 %v830
        %v870 = vunpack.c.l.b16 %v831
        %v871 = vunpack.c.l.b16 %v832
        %v872 = vunpack.c.l.b16 %v833
        %v873 = vunpack.c.l.b16 %v834
        %v874 = vunpack.c.l.b16 %v835
        %v875 = vunpack.c.l.b16 %v836
        %v876 = vunpack.c.l.b16 %v837
        %v877 = vunpack.c.l.b16 %v838
        %v878 = vunpack.c.l.b16 %v839
        %v879 = vunpack.c.l.b16 %v840
        %v880 = vunpack.c.l.b16 %v841
        %v881 = vunpack.c.l.b16 %v842
        %v882 = vunpack.c.l.b16 %v843
        %v883 = vunpack.c.l.b16 %v844
        %v884 = vpack.c.b16 %v869, %v868
        %v885 = vpack.c.b16 %v871, %v870
        %v886 = vpack.c.b16 %v873, %v872
        %v887 = vpack.c.b16 %v875, %v874
        %v888 = vpack.c.b16 %v877, %v876
        %v889 = vpack.c.b16 %v879, %v878
        %v890 = vpack.c.b16 %v881, %v880
        %v891 = vpack.c.b16 %v883, %v882
        %900 = vmatprep.subr.bf16.mxu0 0
        %901 = vmatpush1.bf16.msra.mxu0 %v891
        %902 = vmatprep.subr.bf16.mxu0 0
        %903 = vmatpush1.bf16.msra.mxu0 %v890
        %904 = vmatprep.subr.bf16.mxu0 0
        %905 = vmatpush1.bf16.msra.mxu0 %v889
        %906 = vmatprep.subr.bf16.mxu0 0
        %907 = vmatpush1.bf16.msra.mxu0 %v888
        %908 = vmatprep.subr.bf16.mxu0 0
        %909 = vmatpush1.bf16.msra.mxu0 %v887
        %910 = vmatprep.subr.bf16.mxu0 0
        %911 = vmatpush1.bf16.msra.mxu0 %v886
        %912 = vmatprep.subr.bf16.mxu0 0
        %913 = vmatpush1.bf16.msra.mxu0 %v885
        %914 = vmatprep.subr.bf16.mxu0 0
        %915 = vmatpush1.bf16.msra.mxu0 %v884
        %916 = vmatprep.subr.bf16.mxu0 0
        %917 = vmatpush2.bf16.msra.mxu0 0
        %918 = vmatprep.subr.bf16.mxu0 0
        %919 = vmatpush2.bf16.msra.mxu0 0
        %920 = vmatprep.subr.bf16.mxu0 0
        %921 = vmatpush2.bf16.msra.mxu0 0
        %922 = vmatprep.subr.bf16.mxu0 0
        %923 = vmatpush2.bf16.msra.mxu0 0
        %924 = vmatprep.subr.bf16.mxu0 0
        %925 = vmatpush2.bf16.msra.mxu0 0
        %926 = vmatprep.subr.bf16.mxu0 0
        %927 = vmatpush2.bf16.msra.mxu0 0
        %928 = vmatprep.subr.bf16.mxu0 0
        %929 = vmatpush2.bf16.msra.mxu0 0
        %930 = vmatprep.subr.bf16.mxu0 0
        %931 = vmatpush2.bf16.msra.mxu0 0
        %932 = vmatprep.mubr.bf16.mxu0 0
        %933 = vmatmul.mubr.bf16.gmra.mxu0 %v428
        %v934 = vpop.f32.mrf.mxu0
        %v935 = vadd.f32 %v850, %v934
        %v936 = vpop.f32.mrf.mxu0
        %v937 = vpop.f32.mrf.mxu0
        %v938 = vadd.f32 %v850, %v937
        %v939 = vpop.f32.mrf.mxu0
        %940 = vmatprep.mubr.bf16.mxu0 0
        %941 = vmatmul.mubr.bf16.gmra.mxu0 %v429
        %v942 = vpop.f32.mrf.mxu0
        %v943 = vadd.f32 %v850, %v942
        %v944 = vpop.f32.mrf.mxu0
        %v945 = vpop.f32.mrf.mxu0
        %v946 = vadd.f32 %v850, %v945
        %v947 = vpop.f32.mrf.mxu0
        %948 = vmatprep.mubr.bf16.mxu0 0
        %949 = vmatmul.mubr.bf16.gmra.mxu0 %v430
        %v950 = vpop.f32.mrf.mxu0
        %v951 = vadd.f32 %v850, %v950
        %v952 = vpop.f32.mrf.mxu0
        %v953 = vpop.f32.mrf.mxu0
        %v954 = vadd.f32 %v850, %v953
        %v955 = vpop.f32.mrf.mxu0
        %956 = vmatprep.mubr.bf16.mxu0 0
        %957 = vmatmul.mubr.bf16.gmra.mxu0 %v431
        %v958 = vpop.f32.mrf.mxu0
        %v959 = vadd.f32 %v850, %v958
        %v960 = vpop.f32.mrf.mxu0
        %v961 = vpop.f32.mrf.mxu0
        %v962 = vadd.f32 %v850, %v961
        %v963 = vpop.f32.mrf.mxu0
        %964 = vmatprep.mubr.bf16.mxu0 0
        %965 = vmatmul.mubr.bf16.gmra.mxu0 %v432
        %v966 = vpop.f32.mrf.mxu0
        %v967 = vadd.f32 %v850, %v966
        %v968 = vpop.f32.mrf.mxu0
        %v969 = vpop.f32.mrf.mxu0
        %v970 = vadd.f32 %v850, %v969
        %v971 = vpop.f32.mrf.mxu0
        %972 = vmatprep.mubr.bf16.mxu0 0
        %973 = vmatmul.mubr.bf16.gmra.mxu0 %v433
        %v974 = vpop.f32.mrf.mxu0
        %v975 = vadd.f32 %v850, %v974
        %v976 = vpop.f32.mrf.mxu0
        %v977 = vpop.f32.mrf.mxu0
        %v978 = vadd.f32 %v850, %v977
        %v979 = vpop.f32.mrf.mxu0
        %980 = vmatprep.mubr.bf16.mxu0 0
        %981 = vmatmul.mubr.bf16.gmra.mxu0 %v434
        %v982 = vpop.f32.mrf.mxu0
        %v983 = vadd.f32 %v850, %v982
        %v984 = vpop.f32.mrf.mxu0
        %v985 = vpop.f32.mrf.mxu0
        %v986 = vadd.f32 %v850, %v985
        %v987 = vpop.f32.mrf.mxu0
        %988 = vmatprep.mubr.bf16.mxu0 0
        %989 = vmatmul.mubr.bf16.gmra.mxu0 %v435
        %v990 = vpop.f32.mrf.mxu0
        %v991 = vadd.f32 %v850, %v990
        %v992 = vpop.f32.mrf.mxu0
        %v993 = vpop.f32.mrf.mxu0
        %v994 = vadd.f32 %v850, %v993
        %v995 = vpop.f32.mrf.mxu0
        %996 = vmatprep.mubr.bf16.mxu0 0
        %997 = vmatmul.mubr.bf16.gmra.mxu0 %v436
        %v998 = vpop.f32.mrf.mxu0
        %v999 = vadd.f32 %v850, %v998
        %v1000 = vpop.f32.mrf.mxu0
        %v1001 = vpop.f32.mrf.mxu0
        %v1002 = vadd.f32 %v850, %v1001
        %v1003 = vpop.f32.mrf.mxu0
        %1004 = vmatprep.mubr.bf16.mxu0 0
        %1005 = vmatmul.mubr.bf16.gmra.mxu0 %v437
        %v1006 = vpop.f32.mrf.mxu0
        %v1007 = vadd.f32 %v850, %v1006
        %v1008 = vpop.f32.mrf.mxu0
        %v1009 = vpop.f32.mrf.mxu0
        %v1010 = vadd.f32 %v850, %v1009
        %v1011 = vpop.f32.mrf.mxu0
        %1012 = vmatprep.mubr.bf16.mxu0 0
        %1013 = vmatmul.mubr.bf16.gmra.mxu0 %v438
        %v1014 = vpop.f32.mrf.mxu0
        %v1015 = vadd.f32 %v850, %v1014
        %v1016 = vpop.f32.mrf.mxu0
        %v1017 = vpop.f32.mrf.mxu0
        %v1018 = vadd.f32 %v850, %v1017
        %v1019 = vpop.f32.mrf.mxu0
        %1020 = vmatprep.mubr.bf16.mxu0 0
        %1021 = vmatmul.mubr.bf16.gmra.mxu0 %v439
        %v1022 = vpop.f32.mrf.mxu0
        %v1023 = vadd.f32 %v850, %v1022
        %v1024 = vpop.f32.mrf.mxu0
        %v1025 = vpop.f32.mrf.mxu0
        %v1026 = vadd.f32 %v850, %v1025
        %v1027 = vpop.f32.mrf.mxu0
        %1028 = vmatprep.mubr.bf16.mxu0 0
        %1029 = vmatmul.mubr.bf16.gmra.mxu0 %v440
        %v1030 = vpop.f32.mrf.mxu0
        %v1031 = vadd.f32 %v850, %v1030
        %v1032 = vpop.f32.mrf.mxu0
        %v1033 = vpop.f32.mrf.mxu0
        %v1034 = vadd.f32 %v850, %v1033
        %v1035 = vpop.f32.mrf.mxu0
        %1036 = vmatprep.mubr.bf16.mxu0 0
        %1037 = vmatmul.mubr.bf16.gmra.mxu0 %v441
        %v1038 = vpop.f32.mrf.mxu0
        %v1039 = vadd.f32 %v850, %v1038
        %v1040 = vpop.f32.mrf.mxu0
        %v1041 = vpop.f32.mrf.mxu0
        %v1042 = vadd.f32 %v850, %v1041
        %v1043 = vpop.f32.mrf.mxu0
        %1044 = vmatprep.mubr.bf16.mxu0 0
        %1045 = vmatmul.mubr.bf16.gmra.mxu0 %v442
        %v1046 = vpop.f32.mrf.mxu0
        %v1047 = vadd.f32 %v850, %v1046
        %v1048 = vpop.f32.mrf.mxu0
        %v1049 = vpop.f32.mrf.mxu0
        %v1050 = vadd.f32 %v850, %v1049
        %v1051 = vpop.f32.mrf.mxu0
        %1052 = vmatprep.mubr.bf16.mxu0 0
        %1053 = vmatmul.mubr.bf16.gmra.mxu0 %v443
        %v1054 = vpop.f32.mrf.mxu0
        %v1055 = vadd.f32 %v850, %v1054
        %v1056 = vpop.f32.mrf.mxu0
        %v1057 = vpop.f32.mrf.mxu0
        %v1058 = vadd.f32 %v850, %v1057
        %v1059 = vpop.f32.mrf.mxu0
        %1060 = vmatprep.mubr.bf16.mxu0 0
        %1061 = vmatmul.mubr.bf16.gmra.mxu0 %v444
        %v1062 = vpop.f32.mrf.mxu0
        %v1063 = vadd.f32 %v850, %v1062
        %v1064 = vpop.f32.mrf.mxu0
        %v1065 = vpop.f32.mrf.mxu0
        %v1066 = vadd.f32 %v850, %v1065
        %v1067 = vpop.f32.mrf.mxu0
        %1068 = vmatprep.mubr.bf16.mxu0 0
        %1069 = vmatmul.mubr.bf16.gmra.mxu0 %v445
        %v1070 = vpop.f32.mrf.mxu0
        %v1071 = vadd.f32 %v850, %v1070
        %v1072 = vpop.f32.mrf.mxu0
        %v1073 = vpop.f32.mrf.mxu0
        %v1074 = vadd.f32 %v850, %v1073
        %v1075 = vpop.f32.mrf.mxu0
        %1076 = vmatprep.mubr.bf16.mxu0 0
        %1077 = vmatmul.mubr.bf16.gmra.mxu0 %v446
        %v1078 = vpop.f32.mrf.mxu0
        %v1079 = vadd.f32 %v850, %v1078
        %v1080 = vpop.f32.mrf.mxu0
        %v1081 = vpop.f32.mrf.mxu0
        %v1082 = vadd.f32 %v850, %v1081
        %v1083 = vpop.f32.mrf.mxu0
        %1084 = vmatprep.mubr.bf16.mxu0 0
        %1085 = vmatmul.mubr.bf16.gmra.mxu0 %v447
        %v1086 = vpop.f32.mrf.mxu0
        %v1087 = vadd.f32 %v850, %v1086
        %v1088 = vpop.f32.mrf.mxu0
        %v1089 = vpop.f32.mrf.mxu0
        %v1090 = vadd.f32 %v850, %v1089
        %v1091 = vpop.f32.mrf.mxu0
        %1092 = vmatprep.mubr.bf16.mxu0 0
        %1093 = vmatmul.mubr.bf16.gmra.mxu0 %v448
        %v1094 = vpop.f32.mrf.mxu0
        %v1095 = vadd.f32 %v850, %v1094
        %v1096 = vpop.f32.mrf.mxu0
        %v1097 = vpop.f32.mrf.mxu0
        %v1098 = vadd.f32 %v850, %v1097
        %v1099 = vpop.f32.mrf.mxu0
        %1100 = vmatprep.mubr.bf16.mxu0 0
        %1101 = vmatmul.mubr.bf16.gmra.mxu0 %v449
        %v1102 = vpop.f32.mrf.mxu0
        %v1103 = vadd.f32 %v850, %v1102
        %v1104 = vpop.f32.mrf.mxu0
        %v1105 = vpop.f32.mrf.mxu0
        %v1106 = vadd.f32 %v850, %v1105
        %v1107 = vpop.f32.mrf.mxu0
        %1108 = vmatprep.mubr.bf16.mxu0 0
        %1109 = vmatmul.mubr.bf16.gmra.mxu0 %v450
        %v1110 = vpop.f32.mrf.mxu0
        %v1111 = vadd.f32 %v850, %v1110
        %v1112 = vpop.f32.mrf.mxu0
        %v1113 = vpop.f32.mrf.mxu0
        %v1114 = vadd.f32 %v850, %v1113
        %v1115 = vpop.f32.mrf.mxu0
        %1116 = vmatprep.mubr.bf16.mxu0 0
        %1117 = vmatmul.mubr.bf16.gmra.mxu0 %v451
        %v1118 = vpop.f32.mrf.mxu0
        %v1119 = vadd.f32 %v850, %v1118
        %v1120 = vpop.f32.mrf.mxu0
        %v1121 = vpop.f32.mrf.mxu0
        %v1122 = vadd.f32 %v850, %v1121
        %v1123 = vpop.f32.mrf.mxu0
        %1124 = vmatprep.mubr.bf16.mxu0 0
        %1125 = vmatmul.mubr.bf16.gmra.mxu0 %v452
        %v1126 = vpop.f32.mrf.mxu0
        %v1127 = vadd.f32 %v850, %v1126
        %v1128 = vpop.f32.mrf.mxu0
        %v1129 = vpop.f32.mrf.mxu0
        %v1130 = vadd.f32 %v850, %v1129
        %v1131 = vpop.f32.mrf.mxu0
        %1132 = vmatprep.mubr.bf16.mxu0 0
        %1133 = vmatmul.mubr.bf16.gmra.mxu0 %v453
        %v1134 = vpop.f32.mrf.mxu0
        %v1135 = vadd.f32 %v850, %v1134
        %v1136 = vpop.f32.mrf.mxu0
        %v1137 = vpop.f32.mrf.mxu0
        %v1138 = vadd.f32 %v850, %v1137
        %v1139 = vpop.f32.mrf.mxu0
        %1140 = vmatprep.mubr.bf16.mxu0 0
        %1141 = vmatmul.mubr.bf16.gmra.mxu0 %v454
        %v1142 = vpop.f32.mrf.mxu0
        %v1143 = vadd.f32 %v850, %v1142
        %v1144 = vpop.f32.mrf.mxu0
        %v1145 = vpop.f32.mrf.mxu0
        %v1146 = vadd.f32 %v850, %v1145
        %v1147 = vpop.f32.mrf.mxu0
        %1148 = vmatprep.mubr.bf16.mxu0 0
        %1149 = vmatmul.mubr.bf16.gmra.mxu0 %v455
        %v1150 = vpop.f32.mrf.mxu0
        %v1151 = vadd.f32 %v850, %v1150
        %v1152 = vpop.f32.mrf.mxu0
        %v1153 = vpop.f32.mrf.mxu0
        %v1154 = vadd.f32 %v850, %v1153
        %v1155 = vpop.f32.mrf.mxu0
        %1156 = vmatprep.mubr.bf16.mxu0 0
        %1157 = vmatmul.mubr.bf16.gmra.mxu0 %v456
        %v1158 = vpop.f32.mrf.mxu0
        %v1159 = vadd.f32 %v850, %v1158
        %v1160 = vpop.f32.mrf.mxu0
        %v1161 = vpop.f32.mrf.mxu0
        %v1162 = vadd.f32 %v850, %v1161
        %v1163 = vpop.f32.mrf.mxu0
        %1164 = vmatprep.mubr.bf16.mxu0 0
        %1165 = vmatmul.mubr.bf16.gmra.mxu0 %v457
        %v1166 = vpop.f32.mrf.mxu0
        %v1167 = vadd.f32 %v850, %v1166
        %v1168 = vpop.f32.mrf.mxu0
        %v1169 = vpop.f32.mrf.mxu0
        %v1170 = vadd.f32 %v850, %v1169
        %v1171 = vpop.f32.mrf.mxu0
        %1172 = vmatprep.mubr.bf16.mxu0 0
        %1173 = vmatmul.mubr.bf16.gmra.mxu0 %v458
        %v1174 = vpop.f32.mrf.mxu0
        %v1175 = vadd.f32 %v850, %v1174
        %v1176 = vpop.f32.mrf.mxu0
        %v1177 = vpop.f32.mrf.mxu0
        %v1178 = vadd.f32 %v850, %v1177
        %v1179 = vpop.f32.mrf.mxu0
        %1180 = vmatprep.mubr.bf16.mxu0 0
        %1181 = vmatmul.mubr.bf16.gmra.mxu0 %v459
        %v1182 = vpop.f32.mrf.mxu0
        %v1183 = vadd.f32 %v850, %v1182
        %v1184 = vpop.f32.mrf.mxu0
        %v1185 = vpop.f32.mrf.mxu0
        %v1186 = vadd.f32 %v850, %v1185
        %v1187 = vpop.f32.mrf.mxu0
        %1188 = vdwg.mxu0
        %vm1189 = vcmask 7168
        %v1190 = vsel %vm1189, %v575, -inf
        %v1191 = vsel %vm1189, %v578, -inf
        %v1192 = vmax.f32 %v1190, %v1191
        %v1193 = vsel %vm1189, %v583, -inf
        %v1194 = vmax.f32 %v1192, %v1193
        %v1195 = vsel %vm1189, %v586, -inf
        %v1196 = vmax.f32 %v1194, %v1195
        %v1197 = vsel %vm1189, %v591, -inf
        %v1198 = vmax.f32 %v1196, %v1197
        %v1199 = vsel %vm1189, %v594, -inf
        %v1200 = vmax.f32 %v1198, %v1199
        %v1201 = vsel %vm1189, %v599, -inf
        %v1202 = vmax.f32 %v1200, %v1201
        %v1203 = vsel %vm1189, %v602, -inf
        %v1204 = vmax.f32 %v1202, %v1203
        %v1205 = vrot.slane %v1204, 4
        %v1206 = vmax.f32 %v1204, %v1205
        %v1207 = vrot.slane %v1206, 2
        %v1208 = vmax.f32 %v1206, %v1207
        %v1209 = vrot.slane %v1208, 1
        %v1210 = vmax.f32 %v1208, %v1209
        %v1211 = vsel %vm1189, %v607, -inf
        %v1212 = vsel %vm1189, %v610, -inf
        %v1213 = vmax.f32 %v1211, %v1212
        %v1214 = vsel %vm1189, %v615, -inf
        %v1215 = vmax.f32 %v1213, %v1214
        %v1216 = vsel %vm1189, %v618, -inf
        %v1217 = vmax.f32 %v1215, %v1216
        %v1218 = vsel %vm1189, %v623, -inf
        %v1219 = vmax.f32 %v1217, %v1218
        %v1220 = vsel %vm1189, %v626, -inf
        %v1221 = vmax.f32 %v1219, %v1220
        %v1222 = vsel %vm1189, %v631, -inf
        %v1223 = vmax.f32 %v1221, %v1222
        %v1224 = vsel %vm1189, %v634, -inf
        %v1225 = vmax.f32 %v1223, %v1224
        %v1226 = vrot.slane %v1225, 4
        %v1227 = vmax.f32 %v1225, %v1226
        %v1228 = vrot.slane %v1227, 2
        %v1229 = vmax.f32 %v1227, %v1228
        %v1230 = vrot.slane %v1229, 1
        %v1231 = vmax.f32 %v1229, %v1230
        %v1232 = vsel %vm1189, %v639, -inf
        %v1233 = vsel %vm1189, %v642, -inf
        %v1234 = vmax.f32 %v1232, %v1233
        %v1235 = vsel %vm1189, %v647, -inf
        %v1236 = vmax.f32 %v1234, %v1235
        %v1237 = vsel %vm1189, %v650, -inf
        %v1238 = vmax.f32 %v1236, %v1237
        %v1239 = vsel %vm1189, %v655, -inf
        %v1240 = vmax.f32 %v1238, %v1239
        %v1241 = vsel %vm1189, %v658, -inf
        %v1242 = vmax.f32 %v1240, %v1241
        %v1243 = vsel %vm1189, %v663, -inf
        %v1244 = vmax.f32 %v1242, %v1243
        %v1245 = vsel %vm1189, %v666, -inf
        %v1246 = vmax.f32 %v1244, %v1245
        %v1247 = vrot.slane %v1246, 4
        %v1248 = vmax.f32 %v1246, %v1247
        %v1249 = vrot.slane %v1248, 2
        %v1250 = vmax.f32 %v1248, %v1249
        %v1251 = vrot.slane %v1250, 1
        %v1252 = vmax.f32 %v1250, %v1251
        %v1253 = vsel %vm1189, %v671, -inf
        %v1254 = vsel %vm1189, %v674, -inf
        %v1255 = vmax.f32 %v1253, %v1254
        %v1256 = vsel %vm1189, %v679, -inf
        %v1257 = vmax.f32 %v1255, %v1256
        %v1258 = vsel %vm1189, %v682, -inf
        %v1259 = vmax.f32 %v1257, %v1258
        %v1260 = vsel %vm1189, %v687, -inf
        %v1261 = vmax.f32 %v1259, %v1260
        %v1262 = vsel %vm1189, %v690, -inf
        %v1263 = vmax.f32 %v1261, %v1262
        %v1264 = vsel %vm1189, %v695, -inf
        %v1265 = vmax.f32 %v1263, %v1264
        %v1266 = vsel %vm1189, %v698, -inf
        %v1267 = vmax.f32 %v1265, %v1266
        %v1268 = vrot.slane %v1267, 4
        %v1269 = vmax.f32 %v1267, %v1268
        %v1270 = vrot.slane %v1269, 2
        %v1271 = vmax.f32 %v1269, %v1270
        %v1272 = vrot.slane %v1271, 1
        %v1273 = vmax.f32 %v1271, %v1272
        %v1274 = vsel %vm1189, %v703, -inf
        %v1275 = vsel %vm1189, %v706, -inf
        %v1276 = vmax.f32 %v1274, %v1275
        %v1277 = vsel %vm1189, %v711, -inf
        %v1278 = vmax.f32 %v1276, %v1277
        %v1279 = vsel %vm1189, %v714, -inf
        %v1280 = vmax.f32 %v1278, %v1279
        %v1281 = vsel %vm1189, %v719, -inf
        %v1282 = vmax.f32 %v1280, %v1281
        %v1283 = vsel %vm1189, %v722, -inf
        %v1284 = vmax.f32 %v1282, %v1283
        %v1285 = vsel %vm1189, %v727, -inf
        %v1286 = vmax.f32 %v1284, %v1285
        %v1287 = vsel %vm1189, %v730, -inf
        %v1288 = vmax.f32 %v1286, %v1287
        %v1289 = vrot.slane %v1288, 4
        %v1290 = vmax.f32 %v1288, %v1289
        %v1291 = vrot.slane %v1290, 2
        %v1292 = vmax.f32 %v1290, %v1291
        %v1293 = vrot.slane %v1292, 1
        %v1294 = vmax.f32 %v1292, %v1293
        %v1295 = vsel %vm1189, %v735, -inf
        %v1296 = vsel %vm1189, %v738, -inf
        %v1297 = vmax.f32 %v1295, %v1296
        %v1298 = vsel %vm1189, %v743, -inf
        %v1299 = vmax.f32 %v1297, %v1298
        %v1300 = vsel %vm1189, %v746, -inf
        %v1301 = vmax.f32 %v1299, %v1300
        %v1302 = vsel %vm1189, %v751, -inf
        %v1303 = vmax.f32 %v1301, %v1302
        %v1304 = vsel %vm1189, %v754, -inf
        %v1305 = vmax.f32 %v1303, %v1304
        %v1306 = vsel %vm1189, %v759, -inf
        %v1307 = vmax.f32 %v1305, %v1306
        %v1308 = vsel %vm1189, %v762, -inf
        %v1309 = vmax.f32 %v1307, %v1308
        %v1310 = vrot.slane %v1309, 4
        %v1311 = vmax.f32 %v1309, %v1310
        %v1312 = vrot.slane %v1311, 2
        %v1313 = vmax.f32 %v1311, %v1312
        %v1314 = vrot.slane %v1313, 1
        %v1315 = vmax.f32 %v1313, %v1314
        %v1316 = vsel %vm1189, %v767, -inf
        %v1317 = vsel %vm1189, %v770, -inf
        %v1318 = vmax.f32 %v1316, %v1317
        %v1319 = vsel %vm1189, %v775, -inf
        %v1320 = vmax.f32 %v1318, %v1319
        %v1321 = vsel %vm1189, %v778, -inf
        %v1322 = vmax.f32 %v1320, %v1321
        %v1323 = vsel %vm1189, %v783, -inf
        %v1324 = vmax.f32 %v1322, %v1323
        %v1325 = vsel %vm1189, %v786, -inf
        %v1326 = vmax.f32 %v1324, %v1325
        %v1327 = vsel %vm1189, %v791, -inf
        %v1328 = vmax.f32 %v1326, %v1327
        %v1329 = vsel %vm1189, %v794, -inf
        %v1330 = vmax.f32 %v1328, %v1329
        %v1331 = vrot.slane %v1330, 4
        %v1332 = vmax.f32 %v1330, %v1331
        %v1333 = vrot.slane %v1332, 2
        %v1334 = vmax.f32 %v1332, %v1333
        %v1335 = vrot.slane %v1334, 1
        %v1336 = vmax.f32 %v1334, %v1335
        %v1337 = vsel %vm1189, %v799, -inf
        %v1338 = vsel %vm1189, %v802, -inf
        %v1339 = vmax.f32 %v1337, %v1338
        %v1340 = vsel %vm1189, %v807, -inf
        %v1341 = vmax.f32 %v1339, %v1340
        %v1342 = vsel %vm1189, %v810, -inf
        %v1343 = vmax.f32 %v1341, %v1342
        %v1344 = vsel %vm1189, %v815, -inf
        %v1345 = vmax.f32 %v1343, %v1344
        %v1346 = vsel %vm1189, %v818, -inf
        %v1347 = vmax.f32 %v1345, %v1346
        %v1348 = vsel %vm1189, %v823, -inf
        %v1349 = vmax.f32 %v1347, %v1348
        %v1350 = vsel %vm1189, %v826, -inf
        %v1351 = vmax.f32 %v1349, %v1350
        %v1352 = vrot.slane %v1351, 4
        %v1353 = vmax.f32 %v1351, %v1352
        %v1354 = vrot.slane %v1353, 2
        %v1355 = vmax.f32 %v1353, %v1354
        %v1356 = vrot.slane %v1355, 1
        %v1357 = vmax.f32 %v1355, %v1356
        %v1358 = vsub.f32 %v575, %v1210
        %v1359 = vsub.f32 %v578, %v1210
        %v1360 = vsub.f32 %v583, %v1210
        %v1361 = vsub.f32 %v586, %v1210
        %v1362 = vsub.f32 %v591, %v1210
        %v1363 = vsub.f32 %v594, %v1210
        %v1364 = vsub.f32 %v599, %v1210
        %v1365 = vsub.f32 %v602, %v1210
        %v1366 = vsub.f32 %v607, %v1231
        %v1367 = vsub.f32 %v610, %v1231
        %v1368 = vsub.f32 %v615, %v1231
        %v1369 = vsub.f32 %v618, %v1231
        %v1370 = vsub.f32 %v623, %v1231
        %v1371 = vsub.f32 %v626, %v1231
        %v1372 = vsub.f32 %v631, %v1231
        %v1373 = vsub.f32 %v634, %v1231
        %v1374 = vsub.f32 %v639, %v1252
        %v1375 = vsub.f32 %v642, %v1252
        %v1376 = vsub.f32 %v647, %v1252
        %v1377 = vsub.f32 %v650, %v1252
        %v1378 = vsub.f32 %v655, %v1252
        %v1379 = vsub.f32 %v658, %v1252
        %v1380 = vsub.f32 %v663, %v1252
        %v1381 = vsub.f32 %v666, %v1252
        %v1382 = vsub.f32 %v671, %v1273
        %v1383 = vsub.f32 %v674, %v1273
        %v1384 = vsub.f32 %v679, %v1273
        %v1385 = vsub.f32 %v682, %v1273
        %v1386 = vsub.f32 %v687, %v1273
        %v1387 = vsub.f32 %v690, %v1273
        %v1388 = vsub.f32 %v695, %v1273
        %v1389 = vsub.f32 %v698, %v1273
        %v1390 = vsub.f32 %v703, %v1294
        %v1391 = vsub.f32 %v706, %v1294
        %v1392 = vsub.f32 %v711, %v1294
        %v1393 = vsub.f32 %v714, %v1294
        %v1394 = vsub.f32 %v719, %v1294
        %v1395 = vsub.f32 %v722, %v1294
        %v1396 = vsub.f32 %v727, %v1294
        %v1397 = vsub.f32 %v730, %v1294
        %v1398 = vsub.f32 %v735, %v1315
        %v1399 = vsub.f32 %v738, %v1315
        %v1400 = vsub.f32 %v743, %v1315
        %v1401 = vsub.f32 %v746, %v1315
        %v1402 = vsub.f32 %v751, %v1315
        %v1403 = vsub.f32 %v754, %v1315
        %v1404 = vsub.f32 %v759, %v1315
        %v1405 = vsub.f32 %v762, %v1315
        %v1406 = vsub.f32 %v767, %v1336
        %v1407 = vsub.f32 %v770, %v1336
        %v1408 = vsub.f32 %v775, %v1336
        %v1409 = vsub.f32 %v778, %v1336
        %v1410 = vsub.f32 %v783, %v1336
        %v1411 = vsub.f32 %v786, %v1336
        %v1412 = vsub.f32 %v791, %v1336
        %v1413 = vsub.f32 %v794, %v1336
        %v1414 = vsub.f32 %v799, %v1357
        %v1415 = vsub.f32 %v802, %v1357
        %v1416 = vsub.f32 %v807, %v1357
        %v1417 = vsub.f32 %v810, %v1357
        %v1418 = vsub.f32 %v815, %v1357
        %v1419 = vsub.f32 %v818, %v1357
        %v1420 = vsub.f32 %v823, %v1357
        %v1421 = vsub.f32 %v826, %v1357
        %v1422 = vmul.f32 %v1358, 1.442695
        %v1423 = vpow.pop %v1422
        %v1424 = vmul.f32 %v1359, 1.442695
        %v1425 = vpow.pop %v1424
        %v1426 = vmul.f32 %v1360, 1.442695
        %v1427 = vpow.pop %v1426
        %v1428 = vmul.f32 %v1361, 1.442695
        %v1429 = vpow.pop %v1428
        %v1430 = vmul.f32 %v1362, 1.442695
        %v1431 = vpow.pop %v1430
        %v1432 = vmul.f32 %v1363, 1.442695
        %v1433 = vpow.pop %v1432
        %v1434 = vmul.f32 %v1364, 1.442695
        %v1435 = vpow.pop %v1434
        %v1436 = vmul.f32 %v1365, 1.442695
        %v1437 = vpow.pop %v1436
        %v1438 = vmul.f32 %v1366, 1.442695
        %v1439 = vpow.pop %v1438
        %v1440 = vmul.f32 %v1367, 1.442695
        %v1441 = vpow.pop %v1440
        %v1442 = vmul.f32 %v1368, 1.442695
        %v1443 = vpow.pop %v1442
        %v1444 = vmul.f32 %v1369, 1.442695
        %v1445 = vpow.pop %v1444
        %v1446 = vmul.f32 %v1370, 1.442695
        %v1447 = vpow.pop %v1446
        %v1448 = vmul.f32 %v1371, 1.442695
        %v1449 = vpow.pop %v1448
        %v1450 = vmul.f32 %v1372, 1.442695
        %v1451 = vpow.pop %v1450
        %v1452 = vmul.f32 %v1373, 1.442695
        %v1453 = vpow.pop %v1452
        %v1454 = vmul.f32 %v1374, 1.442695
        %v1455 = vpow.pop %v1454
        %v1456 = vmul.f32 %v1375, 1.442695
        %v1457 = vpow.pop %v1456
        %v1458 = vmul.f32 %v1376, 1.442695
        %v1459 = vpow.pop %v1458
        %v1460 = vmul.f32 %v1377, 1.442695
        %v1461 = vpow.pop %v1460
        %v1462 = vmul.f32 %v1378, 1.442695
        %v1463 = vpow.pop %v1462
        %v1464 = vmul.f32 %v1379, 1.442695
        %v1465 = vpow.pop %v1464
        %v1466 = vmul.f32 %v1380, 1.442695
        %v1467 = vpow.pop %v1466
        %v1468 = vmul.f32 %v1381, 1.442695
        %v1469 = vpow.pop %v1468
        %v1470 = vmul.f32 %v1382, 1.442695
        %v1471 = vpow.pop %v1470
        %v1472 = vmul.f32 %v1383, 1.442695
        %v1473 = vpow.pop %v1472
        %v1474 = vmul.f32 %v1384, 1.442695
        %v1475 = vpow.pop %v1474
        %v1476 = vmul.f32 %v1385, 1.442695
        %v1477 = vpow.pop %v1476
        %v1478 = vmul.f32 %v1386, 1.442695
        %v1479 = vpow.pop %v1478
        %v1480 = vmul.f32 %v1387, 1.442695
        %v1481 = vpow.pop %v1480
        %v1482 = vmul.f32 %v1388, 1.442695
        %v1483 = vpow.pop %v1482
        %v1484 = vmul.f32 %v1389, 1.442695
        %v1485 = vpow.pop %v1484
        %v1486 = vmul.f32 %v1390, 1.442695
        %v1487 = vpow.pop %v1486
        %v1488 = vmul.f32 %v1391, 1.442695
        %v1489 = vpow.pop %v1488
        %v1490 = vmul.f32 %v1392, 1.442695
        %v1491 = vpow.pop %v1490
        %v1492 = vmul.f32 %v1393, 1.442695
        %v1493 = vpow.pop %v1492
        %v1494 = vmul.f32 %v1394, 1.442695
        %v1495 = vpow.pop %v1494
        %v1496 = vmul.f32 %v1395, 1.442695
        %v1497 = vpow.pop %v1496
        %v1498 = vmul.f32 %v1396, 1.442695
        %v1499 = vpow.pop %v1498
        %v1500 = vmul.f32 %v1397, 1.442695
        %v1501 = vpow.pop %v1500
        %v1502 = vmul.f32 %v1398, 1.442695
        %v1503 = vpow.pop %v1502
        %v1504 = vmul.f32 %v1399, 1.442695
        %v1505 = vpow.pop %v1504
        %v1506 = vmul.f32 %v1400, 1.442695
        %v1507 = vpow.pop %v1506
        %v1508 = vmul.f32 %v1401, 1.442695
        %v1509 = vpow.pop %v1508
        %v1510 = vmul.f32 %v1402, 1.442695
        %v1511 = vpow.pop %v1510
        %v1512 = vmul.f32 %v1403, 1.442695
        %v1513 = vpow.pop %v1512
        %v1514 = vmul.f32 %v1404, 1.442695
        %v1515 = vpow.pop %v1514
        %v1516 = vmul.f32 %v1405, 1.442695
        %v1517 = vpow.pop %v1516
        %v1518 = vmul.f32 %v1406, 1.442695
        %v1519 = vpow.pop %v1518
        %v1520 = vmul.f32 %v1407, 1.442695
        %v1521 = vpow.pop %v1520
        %v1522 = vmul.f32 %v1408, 1.442695
        %v1523 = vpow.pop %v1522
        %v1524 = vmul.f32 %v1409, 1.442695
        %v1525 = vpow.pop %v1524
        %v1526 = vmul.f32 %v1410, 1.442695
        %v1527 = vpow.pop %v1526
        %v1528 = vmul.f32 %v1411, 1.442695
        %v1529 = vpow.pop %v1528
        %v1530 = vmul.f32 %v1412, 1.442695
        %v1531 = vpow.pop %v1530
        %v1532 = vmul.f32 %v1413, 1.442695
        %v1533 = vpow.pop %v1532
        %v1534 = vmul.f32 %v1414, 1.442695
        %v1535 = vpow.pop %v1534
        %v1536 = vmul.f32 %v1415, 1.442695
        %v1537 = vpow.pop %v1536
        %v1538 = vmul.f32 %v1416, 1.442695
        %v1539 = vpow.pop %v1538
        %v1540 = vmul.f32 %v1417, 1.442695
        %v1541 = vpow.pop %v1540
        %v1542 = vmul.f32 %v1418, 1.442695
        %v1543 = vpow.pop %v1542
        %v1544 = vmul.f32 %v1419, 1.442695
        %v1545 = vpow.pop %v1544
        %v1546 = vmul.f32 %v1420, 1.442695
        %v1547 = vpow.pop %v1546
        %v1548 = vmul.f32 %v1421, 1.442695
        %v1549 = vpow.pop %v1548
        %v1550 = vsel %vm1189, %v1423, 0.0
        %v1551 = vsel %vm1189, %v1425, 0.0
        %v1552 = vadd.f32 %v1550, %v1551
        %v1553 = vsel %vm1189, %v1427, 0.0
        %v1554 = vadd.f32 %v1552, %v1553
        %v1555 = vsel %vm1189, %v1429, 0.0
        %v1556 = vadd.f32 %v1554, %v1555
        %v1557 = vsel %vm1189, %v1431, 0.0
        %v1558 = vadd.f32 %v1556, %v1557
        %v1559 = vsel %vm1189, %v1433, 0.0
        %v1560 = vadd.f32 %v1558, %v1559
        %v1561 = vsel %vm1189, %v1435, 0.0
        %v1562 = vadd.f32 %v1560, %v1561
        %v1563 = vsel %vm1189, %v1437, 0.0
        %v1564 = vadd.f32 %v1562, %v1563
        %v1565 = vrot.slane %v1564, 4
        %v1566 = vadd.f32 %v1564, %v1565
        %v1567 = vrot.slane %v1566, 2
        %v1568 = vadd.f32 %v1566, %v1567
        %v1569 = vrot.slane %v1568, 1
        %v1570 = vadd.f32 %v1568, %v1569
        %v1571 = vsel %vm1189, %v1439, 0.0
        %v1572 = vsel %vm1189, %v1441, 0.0
        %v1573 = vadd.f32 %v1571, %v1572
        %v1574 = vsel %vm1189, %v1443, 0.0
        %v1575 = vadd.f32 %v1573, %v1574
        %v1576 = vsel %vm1189, %v1445, 0.0
        %v1577 = vadd.f32 %v1575, %v1576
        %v1578 = vsel %vm1189, %v1447, 0.0
        %v1579 = vadd.f32 %v1577, %v1578
        %v1580 = vsel %vm1189, %v1449, 0.0
        %v1581 = vadd.f32 %v1579, %v1580
        %v1582 = vsel %vm1189, %v1451, 0.0
        %v1583 = vadd.f32 %v1581, %v1582
        %v1584 = vsel %vm1189, %v1453, 0.0
        %v1585 = vadd.f32 %v1583, %v1584
        %v1586 = vrot.slane %v1585, 4
        %v1587 = vadd.f32 %v1585, %v1586
        %v1588 = vrot.slane %v1587, 2
        %v1589 = vadd.f32 %v1587, %v1588
        %v1590 = vrot.slane %v1589, 1
        %v1591 = vadd.f32 %v1589, %v1590
        %v1592 = vsel %vm1189, %v1455, 0.0
        %v1593 = vsel %vm1189, %v1457, 0.0
        %v1594 = vadd.f32 %v1592, %v1593
        %v1595 = vsel %vm1189, %v1459, 0.0
        %v1596 = vadd.f32 %v1594, %v1595
        %v1597 = vsel %vm1189, %v1461, 0.0
        %v1598 = vadd.f32 %v1596, %v1597
        %v1599 = vsel %vm1189, %v1463, 0.0
        %v1600 = vadd.f32 %v1598, %v1599
        %v1601 = vsel %vm1189, %v1465, 0.0
        %v1602 = vadd.f32 %v1600, %v1601
        %v1603 = vsel %vm1189, %v1467, 0.0
        %v1604 = vadd.f32 %v1602, %v1603
        %v1605 = vsel %vm1189, %v1469, 0.0
        %v1606 = vadd.f32 %v1604, %v1605
        %v1607 = vrot.slane %v1606, 4
        %v1608 = vadd.f32 %v1606, %v1607
        %v1609 = vrot.slane %v1608, 2
        %v1610 = vadd.f32 %v1608, %v1609
        %v1611 = vrot.slane %v1610, 1
        %v1612 = vadd.f32 %v1610, %v1611
        %v1613 = vsel %vm1189, %v1471, 0.0
        %v1614 = vsel %vm1189, %v1473, 0.0
        %v1615 = vadd.f32 %v1613, %v1614
        %v1616 = vsel %vm1189, %v1475, 0.0
        %v1617 = vadd.f32 %v1615, %v1616
        %v1618 = vsel %vm1189, %v1477, 0.0
        %v1619 = vadd.f32 %v1617, %v1618
        %v1620 = vsel %vm1189, %v1479, 0.0
        %v1621 = vadd.f32 %v1619, %v1620
        %v1622 = vsel %vm1189, %v1481, 0.0
        %v1623 = vadd.f32 %v1621, %v1622
        %v1624 = vsel %vm1189, %v1483, 0.0
        %v1625 = vadd.f32 %v1623, %v1624
        %v1626 = vsel %vm1189, %v1485, 0.0
        %v1627 = vadd.f32 %v1625, %v1626
        %v1628 = vrot.slane %v1627, 4
        %v1629 = vadd.f32 %v1627, %v1628
        %v1630 = vrot.slane %v1629, 2
        %v1631 = vadd.f32 %v1629, %v1630
        %v1632 = vrot.slane %v1631, 1
        %v1633 = vadd.f32 %v1631, %v1632
        %v1634 = vsel %vm1189, %v1487, 0.0
        %v1635 = vsel %vm1189, %v1489, 0.0
        %v1636 = vadd.f32 %v1634, %v1635
        %v1637 = vsel %vm1189, %v1491, 0.0
        %v1638 = vadd.f32 %v1636, %v1637
        %v1639 = vsel %vm1189, %v1493, 0.0
        %v1640 = vadd.f32 %v1638, %v1639
        %v1641 = vsel %vm1189, %v1495, 0.0
        %v1642 = vadd.f32 %v1640, %v1641
        %v1643 = vsel %vm1189, %v1497, 0.0
        %v1644 = vadd.f32 %v1642, %v1643
        %v1645 = vsel %vm1189, %v1499, 0.0
        %v1646 = vadd.f32 %v1644, %v1645
        %v1647 = vsel %vm1189, %v1501, 0.0
        %v1648 = vadd.f32 %v1646, %v1647
        %v1649 = vrot.slane %v1648, 4
        %v1650 = vadd.f32 %v1648, %v1649
        %v1651 = vrot.slane %v1650, 2
        %v1652 = vadd.f32 %v1650, %v1651
        %v1653 = vrot.slane %v1652, 1
        %v1654 = vadd.f32 %v1652, %v1653
        %v1655 = vsel %vm1189, %v1503, 0.0
        %v1656 = vsel %vm1189, %v1505, 0.0
        %v1657 = vadd.f32 %v1655, %v1656
        %v1658 = vsel %vm1189, %v1507, 0.0
        %v1659 = vadd.f32 %v1657, %v1658
        %v1660 = vsel %vm1189, %v1509, 0.0
        %v1661 = vadd.f32 %v1659, %v1660
        %v1662 = vsel %vm1189, %v1511, 0.0
        %v1663 = vadd.f32 %v1661, %v1662
        %v1664 = vsel %vm1189, %v1513, 0.0
        %v1665 = vadd.f32 %v1663, %v1664
        %v1666 = vsel %vm1189, %v1515, 0.0
        %v1667 = vadd.f32 %v1665, %v1666
        %v1668 = vsel %vm1189, %v1517, 0.0
        %v1669 = vadd.f32 %v1667, %v1668
        %v1670 = vrot.slane %v1669, 4
        %v1671 = vadd.f32 %v1669, %v1670
        %v1672 = vrot.slane %v1671, 2
        %v1673 = vadd.f32 %v1671, %v1672
        %v1674 = vrot.slane %v1673, 1
        %v1675 = vadd.f32 %v1673, %v1674
        %v1676 = vsel %vm1189, %v1519, 0.0
        %v1677 = vsel %vm1189, %v1521, 0.0
        %v1678 = vadd.f32 %v1676, %v1677
        %v1679 = vsel %vm1189, %v1523, 0.0
        %v1680 = vadd.f32 %v1678, %v1679
        %v1681 = vsel %vm1189, %v1525, 0.0
        %v1682 = vadd.f32 %v1680, %v1681
        %v1683 = vsel %vm1189, %v1527, 0.0
        %v1684 = vadd.f32 %v1682, %v1683
        %v1685 = vsel %vm1189, %v1529, 0.0
        %v1686 = vadd.f32 %v1684, %v1685
        %v1687 = vsel %vm1189, %v1531, 0.0
        %v1688 = vadd.f32 %v1686, %v1687
        %v1689 = vsel %vm1189, %v1533, 0.0
        %v1690 = vadd.f32 %v1688, %v1689
        %v1691 = vrot.slane %v1690, 4
        %v1692 = vadd.f32 %v1690, %v1691
        %v1693 = vrot.slane %v1692, 2
        %v1694 = vadd.f32 %v1692, %v1693
        %v1695 = vrot.slane %v1694, 1
        %v1696 = vadd.f32 %v1694, %v1695
        %v1697 = vsel %vm1189, %v1535, 0.0
        %v1698 = vsel %vm1189, %v1537, 0.0
        %v1699 = vadd.f32 %v1697, %v1698
        %v1700 = vsel %vm1189, %v1539, 0.0
        %v1701 = vadd.f32 %v1699, %v1700
        %v1702 = vsel %vm1189, %v1541, 0.0
        %v1703 = vadd.f32 %v1701, %v1702
        %v1704 = vsel %vm1189, %v1543, 0.0
        %v1705 = vadd.f32 %v1703, %v1704
        %v1706 = vsel %vm1189, %v1545, 0.0
        %v1707 = vadd.f32 %v1705, %v1706
        %v1708 = vsel %vm1189, %v1547, 0.0
        %v1709 = vadd.f32 %v1707, %v1708
        %v1710 = vsel %vm1189, %v1549, 0.0
        %v1711 = vadd.f32 %v1709, %v1710
        %v1712 = vrot.slane %v1711, 4
        %v1713 = vadd.f32 %v1711, %v1712
        %v1714 = vrot.slane %v1713, 2
        %v1715 = vadd.f32 %v1713, %v1714
        %v1716 = vrot.slane %v1715, 1
        %v1717 = vadd.f32 %v1715, %v1716
        %v1718 = vrcp.pop %v1570
        %v1719 = vrcp.pop %v1591
        %v1720 = vrcp.pop %v1612
        %v1721 = vrcp.pop %v1633
        %v1722 = vrcp.pop %v1654
        %v1723 = vrcp.pop %v1675
        %v1724 = vrcp.pop %v1696
        %v1725 = vrcp.pop %v1717
        %v1726 = vmul.f32 %v1423, %v1718
        %v1727 = vmul.f32 %v1425, %v1718
        %v1728 = vmul.f32 %v1427, %v1718
        %v1729 = vmul.f32 %v1429, %v1718
        %v1730 = vmul.f32 %v1431, %v1718
        %v1731 = vmul.f32 %v1433, %v1718
        %v1732 = vmul.f32 %v1435, %v1718
        %v1733 = vmul.f32 %v1437, %v1718
        %v1734 = vmul.f32 %v1439, %v1719
        %v1735 = vmul.f32 %v1441, %v1719
        %v1736 = vmul.f32 %v1443, %v1719
        %v1737 = vmul.f32 %v1445, %v1719
        %v1738 = vmul.f32 %v1447, %v1719
        %v1739 = vmul.f32 %v1449, %v1719
        %v1740 = vmul.f32 %v1451, %v1719
        %v1741 = vmul.f32 %v1453, %v1719
        %v1742 = vmul.f32 %v1455, %v1720
        %v1743 = vmul.f32 %v1457, %v1720
        %v1744 = vmul.f32 %v1459, %v1720
        %v1745 = vmul.f32 %v1461, %v1720
        %v1746 = vmul.f32 %v1463, %v1720
        %v1747 = vmul.f32 %v1465, %v1720
        %v1748 = vmul.f32 %v1467, %v1720
        %v1749 = vmul.f32 %v1469, %v1720
        %v1750 = vmul.f32 %v1471, %v1721
        %v1751 = vmul.f32 %v1473, %v1721
        %v1752 = vmul.f32 %v1475, %v1721
        %v1753 = vmul.f32 %v1477, %v1721
        %v1754 = vmul.f32 %v1479, %v1721
        %v1755 = vmul.f32 %v1481, %v1721
        %v1756 = vmul.f32 %v1483, %v1721
        %v1757 = vmul.f32 %v1485, %v1721
        %v1758 = vmul.f32 %v1487, %v1722
        %v1759 = vmul.f32 %v1489, %v1722
        %v1760 = vmul.f32 %v1491, %v1722
        %v1761 = vmul.f32 %v1493, %v1722
        %v1762 = vmul.f32 %v1495, %v1722
        %v1763 = vmul.f32 %v1497, %v1722
        %v1764 = vmul.f32 %v1499, %v1722
        %v1765 = vmul.f32 %v1501, %v1722
        %v1766 = vmul.f32 %v1503, %v1723
        %v1767 = vmul.f32 %v1505, %v1723
        %v1768 = vmul.f32 %v1507, %v1723
        %v1769 = vmul.f32 %v1509, %v1723
        %v1770 = vmul.f32 %v1511, %v1723
        %v1771 = vmul.f32 %v1513, %v1723
        %v1772 = vmul.f32 %v1515, %v1723
        %v1773 = vmul.f32 %v1517, %v1723
        %v1774 = vmul.f32 %v1519, %v1724
        %v1775 = vmul.f32 %v1521, %v1724
        %v1776 = vmul.f32 %v1523, %v1724
        %v1777 = vmul.f32 %v1525, %v1724
        %v1778 = vmul.f32 %v1527, %v1724
        %v1779 = vmul.f32 %v1529, %v1724
        %v1780 = vmul.f32 %v1531, %v1724
        %v1781 = vmul.f32 %v1533, %v1724
        %v1782 = vmul.f32 %v1535, %v1725
        %v1783 = vmul.f32 %v1537, %v1725
        %v1784 = vmul.f32 %v1539, %v1725
        %v1785 = vmul.f32 %v1541, %v1725
        %v1786 = vmul.f32 %v1543, %v1725
        %v1787 = vmul.f32 %v1545, %v1725
        %v1788 = vmul.f32 %v1547, %v1725
        %v1789 = vmul.f32 %v1549, %v1725
        %1791 = vset.pattern.permute.xlu0 0
        %1792 = vperm.xlu0 %1791, %v1726
        %v1793 = vpop.permute.xlu0 %1792
        %1796 = vset.pattern.permute.xlu0 0
        %1797 = vperm.xlu0 %1796, %v1727
        %v1798 = vpop.permute.xlu0 %1797
        %1801 = vset.pattern.permute.xlu0 0
        %1802 = vperm.xlu0 %1801, %v1728
        %v1803 = vpop.permute.xlu0 %1802
        %1806 = vset.pattern.permute.xlu0 0
        %1807 = vperm.xlu0 %1806, %v1729
        %v1808 = vpop.permute.xlu0 %1807
        %1811 = vset.pattern.permute.xlu0 0
        %1812 = vperm.xlu0 %1811, %v1730
        %v1813 = vpop.permute.xlu0 %1812
        %1816 = vset.pattern.permute.xlu0 0
        %1817 = vperm.xlu0 %1816, %v1731
        %v1818 = vpop.permute.xlu0 %1817
        %1821 = vset.pattern.permute.xlu0 0
        %1822 = vperm.xlu0 %1821, %v1732
        %v1823 = vpop.permute.xlu0 %1822
        %1826 = vset.pattern.permute.xlu0 0
        %1827 = vperm.xlu0 %1826, %v1733
        %v1828 = vpop.permute.xlu0 %1827
        %1831 = vset.pattern.permute.xlu0 0
        %1832 = vperm.xlu0 %1831, %v1734
        %v1833 = vpop.permute.xlu0 %1832
        %1836 = vset.pattern.permute.xlu0 0
        %1837 = vperm.xlu0 %1836, %v1735
        %v1838 = vpop.permute.xlu0 %1837
        %1841 = vset.pattern.permute.xlu0 0
        %1842 = vperm.xlu0 %1841, %v1736
        %v1843 = vpop.permute.xlu0 %1842
        %1846 = vset.pattern.permute.xlu0 0
        %1847 = vperm.xlu0 %1846, %v1737
        %v1848 = vpop.permute.xlu0 %1847
        %1851 = vset.pattern.permute.xlu0 0
        %1852 = vperm.xlu0 %1851, %v1738
        %v1853 = vpop.permute.xlu0 %1852
        %1856 = vset.pattern.permute.xlu0 0
        %1857 = vperm.xlu0 %1856, %v1739
        %v1858 = vpop.permute.xlu0 %1857
        %1861 = vset.pattern.permute.xlu0 0
        %1862 = vperm.xlu0 %1861, %v1740
        %v1863 = vpop.permute.xlu0 %1862
        %1866 = vset.pattern.permute.xlu0 0
        %1867 = vperm.xlu0 %1866, %v1741
        %v1868 = vpop.permute.xlu0 %1867
        %1871 = vset.pattern.permute.xlu0 0
        %1872 = vperm.xlu0 %1871, %v1742
        %v1873 = vpop.permute.xlu0 %1872
        %1876 = vset.pattern.permute.xlu0 0
        %1877 = vperm.xlu0 %1876, %v1743
        %v1878 = vpop.permute.xlu0 %1877
        %1881 = vset.pattern.permute.xlu0 0
        %1882 = vperm.xlu0 %1881, %v1744
        %v1883 = vpop.permute.xlu0 %1882
        %1886 = vset.pattern.permute.xlu0 0
        %1887 = vperm.xlu0 %1886, %v1745
        %v1888 = vpop.permute.xlu0 %1887
        %1891 = vset.pattern.permute.xlu0 0
        %1892 = vperm.xlu0 %1891, %v1746
        %v1893 = vpop.permute.xlu0 %1892
        %1896 = vset.pattern.permute.xlu0 0
        %1897 = vperm.xlu0 %1896, %v1747
        %v1898 = vpop.permute.xlu0 %1897
        %1901 = vset.pattern.permute.xlu0 0
        %1902 = vperm.xlu0 %1901, %v1748
        %v1903 = vpop.permute.xlu0 %1902
        %1906 = vset.pattern.permute.xlu0 0
        %1907 = vperm.xlu0 %1906, %v1749
        %v1908 = vpop.permute.xlu0 %1907
        %1911 = vset.pattern.permute.xlu0 0
        %1912 = vperm.xlu0 %1911, %v1750
        %v1913 = vpop.permute.xlu0 %1912
        %1916 = vset.pattern.permute.xlu0 0
        %1917 = vperm.xlu0 %1916, %v1751
        %v1918 = vpop.permute.xlu0 %1917
        %1921 = vset.pattern.permute.xlu0 0
        %1922 = vperm.xlu0 %1921, %v1752
        %v1923 = vpop.permute.xlu0 %1922
        %1926 = vset.pattern.permute.xlu0 0
        %1927 = vperm.xlu0 %1926, %v1753
        %v1928 = vpop.permute.xlu0 %1927
        %1931 = vset.pattern.permute.xlu0 0
        %1932 = vperm.xlu0 %1931, %v1754
        %v1933 = vpop.permute.xlu0 %1932
        %1936 = vset.pattern.permute.xlu0 0
        %1937 = vperm.xlu0 %1936, %v1755
        %v1938 = vpop.permute.xlu0 %1937
        %1941 = vset.pattern.permute.xlu0 0
        %1942 = vperm.xlu0 %1941, %v1756
        %v1943 = vpop.permute.xlu0 %1942
        %1946 = vset.pattern.permute.xlu0 0
        %1947 = vperm.xlu0 %1946, %v1757
        %v1948 = vpop.permute.xlu0 %1947
        %1951 = vset.pattern.permute.xlu0 0
        %1952 = vperm.xlu0 %1951, %v1758
        %v1953 = vpop.permute.xlu0 %1952
        %1956 = vset.pattern.permute.xlu0 0
        %1957 = vperm.xlu0 %1956, %v1759
        %v1958 = vpop.permute.xlu0 %1957
        %1961 = vset.pattern.permute.xlu0 0
        %1962 = vperm.xlu0 %1961, %v1760
        %v1963 = vpop.permute.xlu0 %1962
        %1966 = vset.pattern.permute.xlu0 0
        %1967 = vperm.xlu0 %1966, %v1761
        %v1968 = vpop.permute.xlu0 %1967
        %1971 = vset.pattern.permute.xlu0 0
        %1972 = vperm.xlu0 %1971, %v1762
        %v1973 = vpop.permute.xlu0 %1972
        %1976 = vset.pattern.permute.xlu0 0
        %1977 = vperm.xlu0 %1976, %v1763
        %v1978 = vpop.permute.xlu0 %1977
        %1981 = vset.pattern.permute.xlu0 0
        %1982 = vperm.xlu0 %1981, %v1764
        %v1983 = vpop.permute.xlu0 %1982
        %1986 = vset.pattern.permute.xlu0 0
        %1987 = vperm.xlu0 %1986, %v1765
        %v1988 = vpop.permute.xlu0 %1987
        %1991 = vset.pattern.permute.xlu0 0
        %1992 = vperm.xlu0 %1991, %v1766
        %v1993 = vpop.permute.xlu0 %1992
        %1996 = vset.pattern.permute.xlu0 0
        %1997 = vperm.xlu0 %1996, %v1767
        %v1998 = vpop.permute.xlu0 %1997
        %2001 = vset.pattern.permute.xlu0 0
        %2002 = vperm.xlu0 %2001, %v1768
        %v2003 = vpop.permute.xlu0 %2002
        %2006 = vset.pattern.permute.xlu0 0
        %2007 = vperm.xlu0 %2006, %v1769
        %v2008 = vpop.permute.xlu0 %2007
        %2011 = vset.pattern.permute.xlu0 0
        %2012 = vperm.xlu0 %2011, %v1770
        %v2013 = vpop.permute.xlu0 %2012
        %2016 = vset.pattern.permute.xlu0 0
        %2017 = vperm.xlu0 %2016, %v1771
        %v2018 = vpop.permute.xlu0 %2017
        %2021 = vset.pattern.permute.xlu0 0
        %2022 = vperm.xlu0 %2021, %v1772
        %v2023 = vpop.permute.xlu0 %2022
        %2026 = vset.pattern.permute.xlu0 0
        %2027 = vperm.xlu0 %2026, %v1773
        %v2028 = vpop.permute.xlu0 %2027
        %2031 = vset.pattern.permute.xlu0 0
        %2032 = vperm.xlu0 %2031, %v1774
        %v2033 = vpop.permute.xlu0 %2032
        %2036 = vset.pattern.permute.xlu0 0
        %2037 = vperm.xlu0 %2036, %v1775
        %v2038 = vpop.permute.xlu0 %2037
        %2041 = vset.pattern.permute.xlu0 0
        %2042 = vperm.xlu0 %2041, %v1776
        %v2043 = vpop.permute.xlu0 %2042
        %2046 = vset.pattern.permute.xlu0 0
        %2047 = vperm.xlu0 %2046, %v1777
        %v2048 = vpop.permute.xlu0 %2047
        %2051 = vset.pattern.permute.xlu0 0
        %2052 = vperm.xlu0 %2051, %v1778
        %v2053 = vpop.permute.xlu0 %2052
        %2056 = vset.pattern.permute.xlu0 0
        %2057 = vperm.xlu0 %2056, %v1779
        %v2058 = vpop.permute.xlu0 %2057
        %2061 = vset.pattern.permute.xlu0 0
        %2062 = vperm.xlu0 %2061, %v1780
        %v2063 = vpop.permute.xlu0 %2062
        %2066 = vset.pattern.permute.xlu0 0
        %2067 = vperm.xlu0 %2066, %v1781
        %v2068 = vpop.permute.xlu0 %2067
        %2071 = vset.pattern.permute.xlu0 0
        %2072 = vperm.xlu0 %2071, %v1782
        %v2073 = vpop.permute.xlu0 %2072
        %2076 = vset.pattern.permute.xlu0 0
        %2077 = vperm.xlu0 %2076, %v1783
        %v2078 = vpop.permute.xlu0 %2077
        %2081 = vset.pattern.permute.xlu0 0
        %2082 = vperm.xlu0 %2081, %v1784
        %v2083 = vpop.permute.xlu0 %2082
        %2086 = vset.pattern.permute.xlu0 0
        %2087 = vperm.xlu0 %2086, %v1785
        %v2088 = vpop.permute.xlu0 %2087
        %2091 = vset.pattern.permute.xlu0 0
        %2092 = vperm.xlu0 %2091, %v1786
        %v2093 = vpop.permute.xlu0 %2092
        %2096 = vset.pattern.permute.xlu0 0
        %2097 = vperm.xlu0 %2096, %v1787
        %v2098 = vpop.permute.xlu0 %2097
        %2101 = vset.pattern.permute.xlu0 0
        %2102 = vperm.xlu0 %2101, %v1788
        %v2103 = vpop.permute.xlu0 %2102
        %2106 = vset.pattern.permute.xlu0 0
        %2107 = vperm.xlu0 %2106, %v1789
        %v2108 = vpop.permute.xlu0 %2107
        %v2110 = vmul.f32 %v1793, %v935
        %v2111 = vmul.f32 %v1798, %v938
        %v2112 = vmul.f32 %v1803, %v943
        %v2113 = vmul.f32 %v1808, %v946
        %v2114 = vmul.f32 %v1813, %v951
        %v2115 = vmul.f32 %v1818, %v954
        %v2116 = vmul.f32 %v1823, %v959
        %v2117 = vmul.f32 %v1828, %v962
        %v2118 = vmul.f32 %v1833, %v967
        %v2119 = vmul.f32 %v1838, %v970
        %v2120 = vmul.f32 %v1843, %v975
        %v2121 = vmul.f32 %v1848, %v978
        %v2122 = vmul.f32 %v1853, %v983
        %v2123 = vmul.f32 %v1858, %v986
        %v2124 = vmul.f32 %v1863, %v991
        %v2125 = vmul.f32 %v1868, %v994
        %v2126 = vmul.f32 %v1873, %v999
        %v2127 = vmul.f32 %v1878, %v1002
        %v2128 = vmul.f32 %v1883, %v1007
        %v2129 = vmul.f32 %v1888, %v1010
        %v2130 = vmul.f32 %v1893, %v1015
        %v2131 = vmul.f32 %v1898, %v1018
        %v2132 = vmul.f32 %v1903, %v1023
        %v2133 = vmul.f32 %v1908, %v1026
        %v2134 = vmul.f32 %v1913, %v1031
        %v2135 = vmul.f32 %v1918, %v1034
        %v2136 = vmul.f32 %v1923, %v1039
        %v2137 = vmul.f32 %v1928, %v1042
        %v2138 = vmul.f32 %v1933, %v1047
        %v2139 = vmul.f32 %v1938, %v1050
        %v2140 = vmul.f32 %v1943, %v1055
        %v2141 = vmul.f32 %v1948, %v1058
        %v2142 = vmul.f32 %v1953, %v1063
        %v2143 = vmul.f32 %v1958, %v1066
        %v2144 = vmul.f32 %v1963, %v1071
        %v2145 = vmul.f32 %v1968, %v1074
        %v2146 = vmul.f32 %v1973, %v1079
        %v2147 = vmul.f32 %v1978, %v1082
        %v2148 = vmul.f32 %v1983, %v1087
        %v2149 = vmul.f32 %v1988, %v1090
        %v2150 = vmul.f32 %v1993, %v1095
        %v2151 = vmul.f32 %v1998, %v1098
        %v2152 = vmul.f32 %v2003, %v1103
        %v2153 = vmul.f32 %v2008, %v1106
        %v2154 = vmul.f32 %v2013, %v1111
        %v2155 = vmul.f32 %v2018, %v1114
        %v2156 = vmul.f32 %v2023, %v1119
        %v2157 = vmul.f32 %v2028, %v1122
        %v2158 = vmul.f32 %v2033, %v1127
        %v2159 = vmul.f32 %v2038, %v1130
        %v2160 = vmul.f32 %v2043, %v1135
        %v2161 = vmul.f32 %v2048, %v1138
        %v2162 = vmul.f32 %v2053, %v1143
        %v2163 = vmul.f32 %v2058, %v1146
        %v2164 = vmul.f32 %v2063, %v1151
        %v2165 = vmul.f32 %v2068, %v1154
        %v2166 = vmul.f32 %v2073, %v1159
        %v2167 = vmul.f32 %v2078, %v1162
        %v2168 = vmul.f32 %v2083, %v1167
        %v2169 = vmul.f32 %v2088, %v1170
        %v2170 = vmul.f32 %v2093, %v1175
        %v2171 = vmul.f32 %v2098, %v1178
        %v2172 = vmul.f32 %v2103, %v1183
        %v2173 = vmul.f32 %v2108, %v1186
        %v2174 = vadd.f32 %v2110, %v2111
        %v2175 = vadd.f32 %v2174, %v2112
        %v2176 = vadd.f32 %v2175, %v2113
        %v2177 = vadd.f32 %v2176, %v2114
        %v2178 = vadd.f32 %v2177, %v2115
        %v2179 = vadd.f32 %v2178, %v2116
        %v2180 = vadd.f32 %v2179, %v2117
        %v2181 = vrot.slane %v2180, 4
        %v2182 = vadd.f32 %v2180, %v2181
        %v2183 = vrot.slane %v2182, 2
        %v2184 = vadd.f32 %v2182, %v2183
        %v2185 = vrot.slane %v2184, 1
        %v2186 = vadd.f32 %v2184, %v2185
        %v2187 = vadd.f32 %v2118, %v2119
        %v2188 = vadd.f32 %v2187, %v2120
        %v2189 = vadd.f32 %v2188, %v2121
        %v2190 = vadd.f32 %v2189, %v2122
        %v2191 = vadd.f32 %v2190, %v2123
        %v2192 = vadd.f32 %v2191, %v2124
        %v2193 = vadd.f32 %v2192, %v2125
        %v2194 = vrot.slane %v2193, 4
        %v2195 = vadd.f32 %v2193, %v2194
        %v2196 = vrot.slane %v2195, 2
        %v2197 = vadd.f32 %v2195, %v2196
        %v2198 = vrot.slane %v2197, 1
        %v2199 = vadd.f32 %v2197, %v2198
        %v2200 = vadd.f32 %v2126, %v2127
        %v2201 = vadd.f32 %v2200, %v2128
        %v2202 = vadd.f32 %v2201, %v2129
        %v2203 = vadd.f32 %v2202, %v2130
        %v2204 = vadd.f32 %v2203, %v2131
        %v2205 = vadd.f32 %v2204, %v2132
        %v2206 = vadd.f32 %v2205, %v2133
        %v2207 = vrot.slane %v2206, 4
        %v2208 = vadd.f32 %v2206, %v2207
        %v2209 = vrot.slane %v2208, 2
        %v2210 = vadd.f32 %v2208, %v2209
        %v2211 = vrot.slane %v2210, 1
        %v2212 = vadd.f32 %v2210, %v2211
        %v2213 = vadd.f32 %v2134, %v2135
        %v2214 = vadd.f32 %v2213, %v2136
        %v2215 = vadd.f32 %v2214, %v2137
        %v2216 = vadd.f32 %v2215, %v2138
        %v2217 = vadd.f32 %v2216, %v2139
        %v2218 = vadd.f32 %v2217, %v2140
        %v2219 = vadd.f32 %v2218, %v2141
        %v2220 = vrot.slane %v2219, 4
        %v2221 = vadd.f32 %v2219, %v2220
        %v2222 = vrot.slane %v2221, 2
        %v2223 = vadd.f32 %v2221, %v2222
        %v2224 = vrot.slane %v2223, 1
        %v2225 = vadd.f32 %v2223, %v2224
        %v2226 = vadd.f32 %v2142, %v2143
        %v2227 = vadd.f32 %v2226, %v2144
        %v2228 = vadd.f32 %v2227, %v2145
        %v2229 = vadd.f32 %v2228, %v2146
        %v2230 = vadd.f32 %v2229, %v2147
        %v2231 = vadd.f32 %v2230, %v2148
        %v2232 = vadd.f32 %v2231, %v2149
        %v2233 = vrot.slane %v2232, 4
        %v2234 = vadd.f32 %v2232, %v2233
        %v2235 = vrot.slane %v2234, 2
        %v2236 = vadd.f32 %v2234, %v2235
        %v2237 = vrot.slane %v2236, 1
        %v2238 = vadd.f32 %v2236, %v2237
        %v2239 = vadd.f32 %v2150, %v2151
        %v2240 = vadd.f32 %v2239, %v2152
        %v2241 = vadd.f32 %v2240, %v2153
        %v2242 = vadd.f32 %v2241, %v2154
        %v2243 = vadd.f32 %v2242, %v2155
        %v2244 = vadd.f32 %v2243, %v2156
        %v2245 = vadd.f32 %v2244, %v2157
        %v2246 = vrot.slane %v2245, 4
        %v2247 = vadd.f32 %v2245, %v2246
        %v2248 = vrot.slane %v2247, 2
        %v2249 = vadd.f32 %v2247, %v2248
        %v2250 = vrot.slane %v2249, 1
        %v2251 = vadd.f32 %v2249, %v2250
        %v2252 = vadd.f32 %v2158, %v2159
        %v2253 = vadd.f32 %v2252, %v2160
        %v2254 = vadd.f32 %v2253, %v2161
        %v2255 = vadd.f32 %v2254, %v2162
        %v2256 = vadd.f32 %v2255, %v2163
        %v2257 = vadd.f32 %v2256, %v2164
        %v2258 = vadd.f32 %v2257, %v2165
        %v2259 = vrot.slane %v2258, 4
        %v2260 = vadd.f32 %v2258, %v2259
        %v2261 = vrot.slane %v2260, 2
        %v2262 = vadd.f32 %v2260, %v2261
        %v2263 = vrot.slane %v2262, 1
        %v2264 = vadd.f32 %v2262, %v2263
        %v2265 = vadd.f32 %v2166, %v2167
        %v2266 = vadd.f32 %v2265, %v2168
        %v2267 = vadd.f32 %v2266, %v2169
        %v2268 = vadd.f32 %v2267, %v2170
        %v2269 = vadd.f32 %v2268, %v2171
        %v2270 = vadd.f32 %v2269, %v2172
        %v2271 = vadd.f32 %v2270, %v2173
        %v2272 = vrot.slane %v2271, 4
        %v2273 = vadd.f32 %v2271, %v2272
        %v2274 = vrot.slane %v2273, 2
        %v2275 = vadd.f32 %v2273, %v2274
        %v2276 = vrot.slane %v2275, 1
        %v2277 = vadd.f32 %v2275, %v2276
        %v2278 = vpack.c.bf16 %v2186, %v2186
        %v2279 = vpack.c.bf16 %v2199, %v2199
        %v2280 = vpack.c.bf16 %v2212, %v2212
        %v2281 = vpack.c.bf16 %v2225, %v2225
        %v2282 = vpack.c.bf16 %v2238, %v2238
        %v2283 = vpack.c.bf16 %v2251, %v2251
        %v2284 = vpack.c.bf16 %v2264, %v2264
        %v2285 = vpack.c.bf16 %v2277, %v2277
        %vm2286 = vcmask 1040384
        %vm2287 = vsmask.f32 256
        %vm2288 = vmand %vm2286, %vm2287
        %v2289 = vld [vmem:[%s217] sm:$0x1]
        %v2290 = vsel %vm2288, %v2278, %v2289
        %2291 = vst [vmem:[%s217] sm:$0x1] %v2290
        %v2292 = vld [vmem:[%s217 + $0x1] sm:$0x1]
        %v2293 = vsel %vm2288, %v2279, %v2292
        %2294 = vst [vmem:[%s217 + $0x1] sm:$0x1] %v2293
        %v2295 = vld [vmem:[%s217 + $0x2] sm:$0x1]
        %v2296 = vsel %vm2288, %v2280, %v2295
        %2297 = vst [vmem:[%s217 + $0x2] sm:$0x1] %v2296
        %v2298 = vld [vmem:[%s217 + $0x3] sm:$0x1]
        %v2299 = vsel %vm2288, %v2281, %v2298
        %2300 = vst [vmem:[%s217 + $0x3] sm:$0x1] %v2299
        %v2301 = vld [vmem:[%s217 + $0x4] sm:$0x1]
        %v2302 = vsel %vm2288, %v2282, %v2301
        %2303 = vst [vmem:[%s217 + $0x4] sm:$0x1] %v2302
        %v2304 = vld [vmem:[%s217 + $0x5] sm:$0x1]
        %v2305 = vsel %vm2288, %v2283, %v2304
        %2306 = vst [vmem:[%s217 + $0x5] sm:$0x1] %v2305
        %v2307 = vld [vmem:[%s217 + $0x6] sm:$0x1]
        %v2308 = vsel %vm2288, %v2284, %v2307
        %2309 = vst [vmem:[%s217 + $0x6] sm:$0x1] %v2308
        %v2310 = vld [vmem:[%s217 + $0x7] sm:$0x1]
        %v2311 = vsel %vm2288, %v2285, %v2310
        %2312 = vst [vmem:[%s217 + $0x7] sm:$0x1] %v2311
        %s2313 = smul.u32 8, %s18
        %p2314 = scmp.lt.s32.totalorder %s2313, 63
        %s2315 = scalar_select %p2314, %s2313, 63
        %s2316 = scalar_lea.vmem %s4, %s2315
        // Predicated region
        $region41: #{tpu_custom_call.1} parent=35 // pred_check
          %p2317 = pneg %p125
        $region42: #{tpu_custom_call.1} parent=35 // pred_check_branch
          %2319 = sbr.rel (%p2317) target = $region44
        $region43: #{tpu_custom_call.1} parent=35 // pred_region
          %s2320 = smul.u32 8, %s18
        $region44: #{tpu_custom_call.1} parent=35 // pred_fallthru
          _
      $region36: #{tpu_custom_call.1} parent=5 // pred_fallthru
        _
      %p2321 = scmp.le.s32.totalorder 2, %s13
      // Predicated region
      $region45: #{tpu_custom_call.1} parent=5 // pred_check
        %p2322 = pneg %p2321
      $region46: #{tpu_custom_call.1} parent=5 // pred_check_branch
        %2324 = sbr.rel (%p2322) target = $region48
      $region47: #{tpu_custom_call.1} parent=5 // pred_region
        %s2325 = ssub.s32 %s13, 2
        // Predicated region
        $region49: #{tpu_custom_call.1} parent=47 // pred_check
          %p2326 = pneg %p131
        $region50: #{tpu_custom_call.1} parent=47 // pred_check_branch
          %2328 = sbr.rel (%p2326) target = $region52
        $region51: #{tpu_custom_call.1} parent=47 // pred_region
          %s2329 = smul.u32 8, %s19
          %p2330 = scmp.lt.s32.totalorder %s2329, 63
          %s2331 = scalar_select %p2330, %s2329, 63
          %s2332 = scalar_lea.vmem %s4, %s2331
        $region52: #{tpu_custom_call.1} parent=47 // pred_fallthru
          _
      $region48: #{tpu_custom_call.1} parent=5 // pred_fallthru
        _
    $region6: #{tpu_custom_call.1} parent=1 // loop_footer
      %s17 = sadd.s32 1, %s13
    $region7: #{tpu_custom_call.1} parent=1 // loop_footer_branch
      %12 = sbr.rel target = $region3
    $region8: #{tpu_custom_call.1} parent=1 // loop_exit
      _
    %2333 = vsyncpa [#allocation3], 1
    %s2334 = scalar_lea.sflag [#allocation3], 1
    %2335 = vsyncpa %s2334, 1

</llo_original>
